<compile_context>
chip_gen: v6e
topology: v6e:2x2x1
jax: 0.10.0
libtpu: 0.0.40
codegen_flags: <defaults>
</compile_context>

<pallas_src>
import numpy as np
import jax
import jax.numpy as jnp
from jax.experimental import pallas as pl
from jax.experimental.pallas import tpu as pltpu


# ----------------------------------------------------------------------------
# Deterministic "parameters", built at trace time (match SSIM._create_window).
# ----------------------------------------------------------------------------
def _gaussian_1d(window_size: int, sigma: float = 1.5) -> np.ndarray:
    x = np.arange(window_size, dtype=np.float32)
    g = np.exp(-((x - window_size // 2) ** 2) / (2.0 * sigma ** 2))
    return (g / g.sum()).astype(np.float32)


def _banded_conv_matrix(n: int, g: np.ndarray) -> np.ndarray:
    """M (n, n) such that (x @ M)[:, j] = sum_k g[k] * x[:, j + k - P] (zero pad)."""
    ws = int(g.shape[0])
    P = ws // 2
    m = np.zeros((n, n), dtype=np.float32)
    for j in range(n):
        for k in range(ws):
            r = j + k - P
            if 0 <= r < n:
                m[r, j] = g[k]
    return m


_C1 = 0.01 ** 2
_C2 = 0.03 ** 2


def _ssim_map(mu1, mu2, s11, s22, s12):
    mu1_sq = mu1 * mu1
    mu2_sq = mu2 * mu2
    mu1_mu2 = mu1 * mu2
    sigma1_sq = s11 - mu1_sq
    sigma2_sq = s22 - mu2_sq
    sigma12 = s12 - mu1_mu2
    return ((2.0 * mu1_mu2 + _C1) * (2.0 * sigma12 + _C2)) / (
        (mu1_sq + mu2_sq + _C1) * (sigma1_sq + sigma2_sq + _C2)
    )


# ----------------------------------------------------------------------------
# Kernel A (small planes): separable conv on the VPU, taps as constants.
# ----------------------------------------------------------------------------
def _make_vpu_kernel(g: np.ndarray, H: int, W: int):
    ws = int(g.shape[0])
    P = ws // 2
    taps = [float(v) for v in g]          # compile-time immediates

    def kernel(img1_ref, img2_ref, out_ref, vpad_ref, hpad_ref):
        # img*_ref : (1, H, W)        VMEM (native dtype)
        # out_ref  : (1, 1, 1)        VMEM (per-plane ssim-map sum)
        # vpad_ref : (5, H + 2P, W)   VMEM scratch (vertical-pass input)
        # hpad_ref : (5, H, W + 2P)   VMEM scratch (horizontal-pass input)
        x1 = img1_ref[0].astype(jnp.float32)
        x2 = img2_ref[0].astype(jnp.float32)
        planes = (x1, x2, x1 * x1, x2 * x2, x1 * x2)

        # Border strips only (interiors are fully overwritten every step).
        zrow = jnp.zeros((P, W), jnp.float32)
        zcol = jnp.zeros((H, P), jnp.float32)

        convs = []
        for p, x in enumerate(planes):
            # --- vertical (sublane-direction) 11-tap pass -------------------
            vpad_ref[p, pl.ds(0, P), :] = zrow
            vpad_ref[p, pl.ds(H + P, P), :] = zrow
            vpad_ref[p, pl.ds(P, H), :] = x
            v = taps[0] * vpad_ref[p, pl.ds(0, H), :]
            for k in range(1, ws):
                v = v + taps[k] * vpad_ref[p, pl.ds(k, H), :]

            # --- horizontal (lane-direction) 11-tap pass --------------------
            hpad_ref[p, :, pl.ds(0, P)] = zcol
            hpad_ref[p, :, pl.ds(W + P, P)] = zcol
            hpad_ref[p, :, pl.ds(P, W)] = v
            c = taps[0] * hpad_ref[p, :, pl.ds(0, W)]
            for k in range(1, ws):
                c = c + taps[k] * hpad_ref[p, :, pl.ds(k, W)]
            convs.append(c)

        ssim = _ssim_map(*convs)
        out_ref[0] = jnp.sum(ssim, keepdims=True)

    return kernel


# ----------------------------------------------------------------------------
# Kernel B (large planes): separable conv as two banded matmuls on the MXU.
# ----------------------------------------------------------------------------
def _make_mxu_kernel(H: int, W: int):
    def kernel(gr_ref, gc_ref, img1_ref, img2_ref, out_ref):
        # gr_ref : (H, H) banded matrix, gr @ x == vertical  "same" conv
        # gc_ref : (W, W) banded matrix, x @ gc == horizontal "same" conv
        x1 = img1_ref[0].astype(jnp.float32)
        x2 = img2_ref[0].astype(jnp.float32)
        gr = gr_ref[...]
        gc = gc_ref[...]

        def conv(x):
            t = jnp.dot(x, gc, preferred_element_type=jnp.float32)
            return jnp.dot(gr, t, preferred_element_type=jnp.float32)

        ssim = _ssim_map(conv(x1), conv(x2), conv(x1 * x1),
                         conv(x2 * x2), conv(x1 * x2))
        out_ref[0] = jnp.sum(ssim, keepdims=True)

    return kernel


# ----------------------------------------------------------------------------
# Wrapper: grid / BlockSpecs, path selection, final reduction.
# ----------------------------------------------------------------------------
def ssim_loss(img1, img2, window_size: int = 11, size_average: bool = True):
    B, C, H, W = img1.shape
    P = window_size // 2
    g = _gaussian_1d(window_size)
    n_planes = B * C

    # (B, C, H, W) -> (B*C, H, W): free metadata reshape; native dtype kept.
    x1 = img1.reshape(n_planes, H, W)
    x2 = img2.reshape(n_planes, H, W)

    plane_spec = pl.BlockSpec((1, H, W), lambda i: (i, 0, 0))
    out_spec = pl.BlockSpec((1, 1, 1), lambda i: (i, 0, 0))

    use_mxu = min(H, W) >= 128        # route the conv to the MXU for real images
    if use_mxu:
        kernel = _make_mxu_kernel(H, W)
        gr = jnp.asarray(_banded_conv_matrix(H, g).T)   # (H, H)
        gc = jnp.asarray(_banded_conv_matrix(W, g))     # (W, W)
        in_specs = [
            pl.BlockSpec((H, H), lambda i: (0, 0)),
            pl.BlockSpec((W, W), lambda i: (0, 0)),
            plane_spec,
            plane_spec,
        ]
        args = (gr, gc, x1, x2)
        scratch_shapes = []
    else:
        kernel = _make_vpu_kernel(g, H, W)
        in_specs = [plane_spec, plane_spec]
        args = (x1, x2)
        scratch_shapes = [
            pltpu.VMEM((5, H + 2 * P, W), jnp.float32),
            pltpu.VMEM((5, H, W + 2 * P), jnp.float32),
        ]

    # TODO(synk): for very large planes, tile H with a 2P-row halo instead of
    # whole-plane blocks so the working set fits v7x's 64 MiB VMEM.
    sums = pl.pallas_call(
        kernel,
        out_shape=jax.ShapeDtypeStruct((n_planes, 1, 1), jnp.float32),
        grid_spec=pltpu.PrefetchScalarGridSpec(
            num_scalar_prefetch=0,
            grid=(n_planes,),
            in_specs=in_specs,
            out_specs=out_spec,
            scratch_shapes=scratch_shapes,
        ),
        compiler_params=pltpu.CompilerParams(
            dimension_semantics=("parallel",),
        ),
    )(*args)

    plane_means = sums[:, 0, 0].reshape(B, C) / float(H * W)
    if size_average:
        return 1.0 - jnp.mean(plane_means)            # scalar
    return 1.0 - jnp.mean(plane_means, axis=1)        # (B,)


# ----------------------------------------------------------------------------
# Pure-JAX reference (brute-force 121-tap conv, independent of the kernel).
# ----------------------------------------------------------------------------
def _ssim_ref(img1, img2, window_size=11, size_average=True):
    B, C, H, W = img1.shape
    P = window_size // 2
    g = _gaussian_1d(window_size)
    win = jnp.asarray(np.outer(g, g).astype(np.float32))

    img1 = img1.astype(jnp.float32)
    img2 = img2.astype(jnp.float32)

    def conv(x):
        xp = jnp.pad(x, ((0, 0), (0, 0), (P, P), (P, P)))
        out = jnp.zeros_like(x)
        for ky in range(window_size):
            for kx in range(window_size):
                out = out + win[ky, kx] * xp[:, :, ky:ky + H, kx:kx + W]
        return out

    mu1, mu2 = conv(img1), conv(img2)
    mu1_sq, mu2_sq, mu1_mu2 = mu1 * mu1, mu2 * mu2, mu1 * mu2
    sigma1_sq = conv(img1 * img1) - mu1_sq
    sigma2_sq = conv(img2 * img2) - mu2_sq
    sigma12 = conv(img1 * img2) - mu1_mu2
    ssim_map = ((2 * mu1_mu2 + _C1) * (2 * sigma12 + _C2)) / (
        (mu1_sq + mu2_sq + _C1) * (sigma1_sq + sigma2_sq + _C2))
    if size_average:
        return 1.0 - jnp.mean(ssim_map)
    return 1.0 - jnp.mean(ssim_map, axis=(1, 2, 3))


if __name__ == "__main__":
    key = jax.random.PRNGKey(0)
    k1, k2 = jax.random.split(key)
    B, C, H, W = 2, 4, 16, 16
    img1 = jax.random.uniform(k1, (B, C, H, W), dtype=jnp.float32)
    img2 = jax.random.uniform(k2, (B, C, H, W), dtype=jnp.float32)

    out = jax.block_until_ready(ssim_loss(img1, img2))
    ref = jax.block_until_ready(_ssim_ref(img1, img2))
    np.testing.assert_allclose(np.asarray(out), np.asarray(ref),
                               rtol=1e-4, atol=1e-5)

    out_b = jax.block_until_ready(ssim_loss(img1, img2, size_average=False))
    ref_b = jax.block_until_ready(_ssim_ref(img1, img2, size_average=False))
    np.testing.assert_allclose(np.asarray(out_b), np.asarray(ref_b),
                               rtol=1e-4, atol=1e-5)

    print("KERNEL_OK")
</pallas_src>

<mosaic_0001>
module attributes {stable_mosaic.version = 11 : i64} {
  func.func @kernel(%arg0: i32, %arg1: memref<1x16x16xf32, #tpu.memory_space<vmem>>, %arg2: memref<1x16x16xf32, #tpu.memory_space<vmem>>, %arg3: memref<1x1x1xf32, #tpu.memory_space<vmem>>, %arg4: memref<5x26x16xf32, #tpu.memory_space<vmem>>, %arg5: memref<5x16x26xf32, #tpu.memory_space<vmem>>) attributes {dimension_semantics = [#tpu.dimension_semantics<parallel>], iteration_bounds = array<i64: 8>, scalar_prefetch = 0 : i64, scratch_operands = 2 : i64, tpu.core_type = #tpu.core_type<tc>, window_params = [{transform_indices = @transform_0, window_bounds = array<i64: 1, 16, 16>}, {transform_indices = @transform_1, window_bounds = array<i64: 1, 16, 16>}, {transform_indices = @transform_2, window_bounds = array<i64: 1, 1, 1>}]} {
    %c0 = arith.constant 0 : index
    %c0_0 = arith.constant 0 : index
    %c0_1 = arith.constant 0 : index
    %0 = vector.load %arg1[%c0, %c0_0, %c0_1] : memref<1x16x16xf32, #tpu.memory_space<vmem>>, vector<1x16x16xf32>
    %1 = vector.shape_cast %0 : vector<1x16x16xf32> to vector<16x16xf32>
    %c0_2 = arith.constant 0 : index
    %c0_3 = arith.constant 0 : index
    %c0_4 = arith.constant 0 : index
    %2 = vector.load %arg2[%c0_2, %c0_3, %c0_4] : memref<1x16x16xf32, #tpu.memory_space<vmem>>, vector<1x16x16xf32>
    %3 = vector.shape_cast %2 : vector<1x16x16xf32> to vector<16x16xf32>
    %4 = arith.mulf %1, %1 : vector<16x16xf32>
    %5 = arith.mulf %3, %3 : vector<16x16xf32>
    %6 = arith.mulf %1, %3 : vector<16x16xf32>
    %cst = arith.constant 0.000000e+00 : f32
    %7 = vector.broadcast %cst : f32 to vector<5x16xf32>
    %cst_5 = arith.constant 0.000000e+00 : f32
    %8 = vector.broadcast %cst_5 : f32 to vector<16x5xf32>
    %c0_6 = arith.constant 0 : index
    %c0_7 = arith.constant 0 : index
    %c0_8 = arith.constant 0 : index
    %9 = vector.load %arg4[%c0_6, %c0_7, %c0_8] : memref<5x26x16xf32, #tpu.memory_space<vmem>>, vector<1x5x16xf32>
    %10 = vector.shape_cast %9 : vector<1x5x16xf32> to vector<5x16xf32>
    %11 = vector.shape_cast %7 : vector<5x16xf32> to vector<1x5x16xf32>
    tpu.vector_store %arg4[%c0_6, %c0_7, %c0_8], %11 {strides = array<i32>} : memref<5x26x16xf32, #tpu.memory_space<vmem>>, vector<1x5x16xf32>,
    %c0_9 = arith.constant 0 : index
    %c21 = arith.constant 21 : index
    %c0_10 = arith.constant 0 : index
    %12 = vector.load %arg4[%c0_9, %c21, %c0_10] : memref<5x26x16xf32, #tpu.memory_space<vmem>>, vector<1x5x16xf32>
    %13 = vector.shape_cast %12 : vector<1x5x16xf32> to vector<5x16xf32>
    %14 = vector.shape_cast %7 : vector<5x16xf32> to vector<1x5x16xf32>
    tpu.vector_store %arg4[%c0_9, %c21, %c0_10], %14 {strides = array<i32>} : memref<5x26x16xf32, #tpu.memory_space<vmem>>, vector<1x5x16xf32>,
    %c0_11 = arith.constant 0 : index
    %c5 = arith.constant 5 : index
    %c0_12 = arith.constant 0 : index
    %15 = vector.load %arg4[%c0_11, %c5, %c0_12] : memref<5x26x16xf32, #tpu.memory_space<vmem>>, vector<1x16x16xf32>
    %16 = vector.shape_cast %15 : vector<1x16x16xf32> to vector<16x16xf32>
    %17 = vector.shape_cast %1 : vector<16x16xf32> to vector<1x16x16xf32>
    tpu.vector_store %arg4[%c0_11, %c5, %c0_12], %17 {strides = array<i32>} : memref<5x26x16xf32, #tpu.memory_space<vmem>>, vector<1x16x16xf32>,
    %c0_13 = arith.constant 0 : index
    %c0_14 = arith.constant 0 : index
    %c0_15 = arith.constant 0 : index
    %18 = vector.load %arg4[%c0_13, %c0_14, %c0_15] : memref<5x26x16xf32, #tpu.memory_space<vmem>>, vector<1x16x16xf32>
    %19 = vector.shape_cast %18 : vector<1x16x16xf32> to vector<16x16xf32>
    %cst_16 = arith.constant 0.00102838036 : f32
    %20 = vector.broadcast %cst_16 : f32 to vector<16x16xf32>
    %21 = arith.mulf %20, %19 : vector<16x16xf32>
    %c0_17 = arith.constant 0 : index
    %c1 = arith.constant 1 : index
    %c0_18 = arith.constant 0 : index
    %22 = vector.load %arg4[%c0_17, %c1, %c0_18] : memref<5x26x16xf32, #tpu.memory_space<vmem>>, vector<1x16x16xf32>
    %23 = vector.shape_cast %22 : vector<1x16x16xf32> to vector<16x16xf32>
    %cst_19 = arith.constant 0.00759875868 : f32
    %24 = vector.broadcast %cst_19 : f32 to vector<16x16xf32>
    %25 = arith.mulf %24, %23 : vector<16x16xf32>
    %26 = arith.addf %21, %25 : vector<16x16xf32>
    %c0_20 = arith.constant 0 : index
    %c2 = arith.constant 2 : index
    %c0_21 = arith.constant 0 : index
    %27 = vector.load %arg4[%c0_20, %c2, %c0_21] : memref<5x26x16xf32, #tpu.memory_space<vmem>>, vector<1x16x16xf32>
    %28 = vector.shape_cast %27 : vector<1x16x16xf32> to vector<16x16xf32>
    %cst_22 = arith.constant 0.0360007733 : f32
    %29 = vector.broadcast %cst_22 : f32 to vector<16x16xf32>
    %30 = arith.mulf %29, %28 : vector<16x16xf32>
    %31 = arith.addf %26, %30 : vector<16x16xf32>
    %c0_23 = arith.constant 0 : index
    %c3 = arith.constant 3 : index
    %c0_24 = arith.constant 0 : index
    %32 = vector.load %arg4[%c0_23, %c3, %c0_24] : memref<5x26x16xf32, #tpu.memory_space<vmem>>, vector<1x16x16xf32>
    %33 = vector.shape_cast %32 : vector<1x16x16xf32> to vector<16x16xf32>
    %cst_25 = arith.constant 0.109360702 : f32
    %34 = vector.broadcast %cst_25 : f32 to vector<16x16xf32>
    %35 = arith.mulf %34, %33 : vector<16x16xf32>
    %36 = arith.addf %31, %35 : vector<16x16xf32>
    %c0_26 = arith.constant 0 : index
    %c4 = arith.constant 4 : index
    %c0_27 = arith.constant 0 : index
    %37 = vector.load %arg4[%c0_26, %c4, %c0_27] : memref<5x26x16xf32, #tpu.memory_space<vmem>>, vector<1x16x16xf32>
    %38 = vector.shape_cast %37 : vector<1x16x16xf32> to vector<16x16xf32>
    %cst_28 = arith.constant 0.213005543 : f32
    %39 = vector.broadcast %cst_28 : f32 to vector<16x16xf32>
    %40 = arith.mulf %39, %38 : vector<16x16xf32>
    %41 = arith.addf %36, %40 : vector<16x16xf32>
    %c0_29 = arith.constant 0 : index
    %c5_30 = arith.constant 5 : index
    %c0_31 = arith.constant 0 : index
    %42 = vector.load %arg4[%c0_29, %c5_30, %c0_31] : memref<5x26x16xf32, #tpu.memory_space<vmem>>, vector<1x16x16xf32>
    %43 = vector.shape_cast %42 : vector<1x16x16xf32> to vector<16x16xf32>
    %cst_32 = arith.constant 0.266011745 : f32
    %44 = vector.broadcast %cst_32 : f32 to vector<16x16xf32>
    %45 = arith.mulf %44, %43 : vector<16x16xf32>
    %46 = arith.addf %41, %45 : vector<16x16xf32>
    %c0_33 = arith.constant 0 : index
    %c6 = arith.constant 6 : index
    %c0_34 = arith.constant 0 : index
    %47 = vector.load %arg4[%c0_33, %c6, %c0_34] : memref<5x26x16xf32, #tpu.memory_space<vmem>>, vector<1x16x16xf32>
    %48 = vector.shape_cast %47 : vector<1x16x16xf32> to vector<16x16xf32>
    %cst_35 = arith.constant 0.213005543 : f32
    %49 = vector.broadcast %cst_35 : f32 to vector<16x16xf32>
    %50 = arith.mulf %49, %48 : vector<16x16xf32>
    %51 = arith.addf %46, %50 : vector<16x16xf32>
    %c0_36 = arith.constant 0 : index
    %c7 = arith.constant 7 : index
    %c0_37 = arith.constant 0 : index
    %52 = vector.load %arg4[%c0_36, %c7, %c0_37] : memref<5x26x16xf32, #tpu.memory_space<vmem>>, vector<1x16x16xf32>
    %53 = vector.shape_cast %52 : vector<1x16x16xf32> to vector<16x16xf32>
    %cst_38 = arith.constant 0.109360702 : f32
    %54 = vector.broadcast %cst_38 : f32 to vector<16x16xf32>
    %55 = arith.mulf %54, %53 : vector<16x16xf32>
    %56 = arith.addf %51, %55 : vector<16x16xf32>
    %c0_39 = arith.constant 0 : index
    %c8 = arith.constant 8 : index
    %c0_40 = arith.constant 0 : index
    %57 = vector.load %arg4[%c0_39, %c8, %c0_40] : memref<5x26x16xf32, #tpu.memory_space<vmem>>, vector<1x16x16xf32>
    %58 = vector.shape_cast %57 : vector<1x16x16xf32> to vector<16x16xf32>
    %cst_41 = arith.constant 0.0360007733 : f32
    %59 = vector.broadcast %cst_41 : f32 to vector<16x16xf32>
    %60 = arith.mulf %59, %58 : vector<16x16xf32>
    %61 = arith.addf %56, %60 : vector<16x16xf32>
    %c0_42 = arith.constant 0 : index
    %c9 = arith.constant 9 : index
    %c0_43 = arith.constant 0 : index
    %62 = vector.load %arg4[%c0_42, %c9, %c0_43] : memref<5x26x16xf32, #tpu.memory_space<vmem>>, vector<1x16x16xf32>
    %63 = vector.shape_cast %62 : vector<1x16x16xf32> to vector<16x16xf32>
    %cst_44 = arith.constant 0.00759875868 : f32
    %64 = vector.broadcast %cst_44 : f32 to vector<16x16xf32>
    %65 = arith.mulf %64, %63 : vector<16x16xf32>
    %66 = arith.addf %61, %65 : vector<16x16xf32>
    %c0_45 = arith.constant 0 : index
    %c10 = arith.constant 10 : index
    %c0_46 = arith.constant 0 : index
    %67 = vector.load %arg4[%c0_45, %c10, %c0_46] : memref<5x26x16xf32, #tpu.memory_space<vmem>>, vector<1x16x16xf32>
    %68 = vector.shape_cast %67 : vector<1x16x16xf32> to vector<16x16xf32>
    %cst_47 = arith.constant 0.00102838036 : f32
    %69 = vector.broadcast %cst_47 : f32 to vector<16x16xf32>
    %70 = arith.mulf %69, %68 : vector<16x16xf32>
    %71 = arith.addf %66, %70 : vector<16x16xf32>
    %c0_48 = arith.constant 0 : index
    %c0_49 = arith.constant 0 : index
    %c0_50 = arith.constant 0 : index
    %72 = vector.load %arg5[%c0_48, %c0_49, %c0_50] : memref<5x16x26xf32, #tpu.memory_space<vmem>>, vector<1x16x5xf32>
    %73 = vector.shape_cast %72 : vector<1x16x5xf32> to vector<16x5xf32>
    %74 = vector.shape_cast %8 : vector<16x5xf32> to vector<1x16x5xf32>
    tpu.vector_store %arg5[%c0_48, %c0_49, %c0_50], %74 {strides = array<i32>} : memref<5x16x26xf32, #tpu.memory_space<vmem>>, vector<1x16x5xf32>,
    %c0_51 = arith.constant 0 : index
    %c0_52 = arith.constant 0 : index
    %c21_53 = arith.constant 21 : index
    %75 = vector.load %arg5[%c0_51, %c0_52, %c21_53] : memref<5x16x26xf32, #tpu.memory_space<vmem>>, vector<1x16x5xf32>
    %76 = vector.shape_cast %75 : vector<1x16x5xf32> to vector<16x5xf32>
    %77 = vector.shape_cast %8 : vector<16x5xf32> to vector<1x16x5xf32>
    tpu.vector_store %arg5[%c0_51, %c0_52, %c21_53], %77 {strides = array<i32>} : memref<5x16x26xf32, #tpu.memory_space<vmem>>, vector<1x16x5xf32>,
    %c0_54 = arith.constant 0 : index
    %c0_55 = arith.constant 0 : index
    %c5_56 = arith.constant 5 : index
    %78 = vector.load %arg5[%c0_54, %c0_55, %c5_56] : memref<5x16x26xf32, #tpu.memory_space<vmem>>, vector<1x16x16xf32>
    %79 = vector.shape_cast %78 : vector<1x16x16xf32> to vector<16x16xf32>
    %80 = vector.shape_cast %71 : vector<16x16xf32> to vector<1x16x16xf32>
    tpu.vector_store %arg5[%c0_54, %c0_55, %c5_56], %80 {strides = array<i32>} : memref<5x16x26xf32, #tpu.memory_space<vmem>>, vector<1x16x16xf32>,
    %c0_57 = arith.constant 0 : index
    %c0_58 = arith.constant 0 : index
    %c0_59 = arith.constant 0 : index
    %81 = vector.load %arg5[%c0_57, %c0_58, %c0_59] : memref<5x16x26xf32, #tpu.memory_space<vmem>>, vector<1x16x16xf32>
    %82 = vector.shape_cast %81 : vector<1x16x16xf32> to vector<16x16xf32>
    %cst_60 = arith.constant 0.00102838036 : f32
    %83 = vector.broadcast %cst_60 : f32 to vector<16x16xf32>
    %84 = arith.mulf %83, %82 : vector<16x16xf32>
    %c0_61 = arith.constant 0 : index
    %c0_62 = arith.constant 0 : index
    %c1_63 = arith.constant 1 : index
    %85 = vector.load %arg5[%c0_61, %c0_62, %c1_63] : memref<5x16x26xf32, #tpu.memory_space<vmem>>, vector<1x16x16xf32>
    %86 = vector.shape_cast %85 : vector<1x16x16xf32> to vector<16x16xf32>
    %cst_64 = arith.constant 0.00759875868 : f32
    %87 = vector.broadcast %cst_64 : f32 to vector<16x16xf32>
    %88 = arith.mulf %87, %86 : vector<16x16xf32>
    %89 = arith.addf %84, %88 : vector<16x16xf32>
    %c0_65 = arith.constant 0 : index
    %c0_66 = arith.constant 0 : index
    %c2_67 = arith.constant 2 : index
    %90 = vector.load %arg5[%c0_65, %c0_66, %c2_67] : memref<5x16x26xf32, #tpu.memory_space<vmem>>, vector<1x16x16xf32>
    %91 = vector.shape_cast %90 : vector<1x16x16xf32> to vector<16x16xf32>
    %cst_68 = arith.constant 0.0360007733 : f32
    %92 = vector.broadcast %cst_68 : f32 to vector<16x16xf32>
    %93 = arith.mulf %92, %91 : vector<16x16xf32>
    %94 = arith.addf %89, %93 : vector<16x16xf32>
    %c0_69 = arith.constant 0 : index
    %c0_70 = arith.constant 0 : index
    %c3_71 = arith.constant 3 : index
    %95 = vector.load %arg5[%c0_69, %c0_70, %c3_71] : memref<5x16x26xf32, #tpu.memory_space<vmem>>, vector<1x16x16xf32>
    %96 = vector.shape_cast %95 : vector<1x16x16xf32> to vector<16x16xf32>
    %cst_72 = arith.constant 0.109360702 : f32
    %97 = vector.broadcast %cst_72 : f32 to vector<16x16xf32>
    %98 = arith.mulf %97, %96 : vector<16x16xf32>
    %99 = arith.addf %94, %98 : vector<16x16xf32>
    %c0_73 = arith.constant 0 : index
    %c0_74 = arith.constant 0 : index
    %c4_75 = arith.constant 4 : index
    %100 = vector.load %arg5[%c0_73, %c0_74, %c4_75] : memref<5x16x26xf32, #tpu.memory_space<vmem>>, vector<1x16x16xf32>
    %101 = vector.shape_cast %100 : vector<1x16x16xf32> to vector<16x16xf32>
    %cst_76 = arith.constant 0.213005543 : f32
    %102 = vector.broadcast %cst_76 : f32 to vector<16x16xf32>
    %103 = arith.mulf %102, %101 : vector<16x16xf32>
    %104 = arith.addf %99, %103 : vector<16x16xf32>
    %c0_77 = arith.constant 0 : index
    %c0_78 = arith.constant 0 : index
    %c5_79 = arith.constant 5 : index
    %105 = vector.load %arg5[%c0_77, %c0_78, %c5_79] : memref<5x16x26xf32, #tpu.memory_space<vmem>>, vector<1x16x16xf32>
    %106 = vector.shape_cast %105 : vector<1x16x16xf32> to vector<16x16xf32>
    %cst_80 = arith.constant 0.266011745 : f32
    %107 = vector.broadcast %cst_80 : f32 to vector<16x16xf32>
    %108 = arith.mulf %107, %106 : vector<16x16xf32>
    %109 = arith.addf %104, %108 : vector<16x16xf32>
    %c0_81 = arith.constant 0 : index
    %c0_82 = arith.constant 0 : index
    %c6_83 = arith.constant 6 : index
    %110 = vector.load %arg5[%c0_81, %c0_82, %c6_83] : memref<5x16x26xf32, #tpu.memory_space<vmem>>, vector<1x16x16xf32>
    %111 = vector.shape_cast %110 : vector<1x16x16xf32> to vector<16x16xf32>
    %cst_84 = arith.constant 0.213005543 : f32
    %112 = vector.broadcast %cst_84 : f32 to vector<16x16xf32>
    %113 = arith.mulf %112, %111 : vector<16x16xf32>
    %114 = arith.addf %109, %113 : vector<16x16xf32>
    %c0_85 = arith.constant 0 : index
    %c0_86 = arith.constant 0 : index
    %c7_87 = arith.constant 7 : index
    %115 = vector.load %arg5[%c0_85, %c0_86, %c7_87] : memref<5x16x26xf32, #tpu.memory_space<vmem>>, vector<1x16x16xf32>
    %116 = vector.shape_cast %115 : vector<1x16x16xf32> to vector<16x16xf32>
    %cst_88 = arith.constant 0.109360702 : f32
    %117 = vector.broadcast %cst_88 : f32 to vector<16x16xf32>
    %118 = arith.mulf %117, %116 : vector<16x16xf32>
    %119 = arith.addf %114, %118 : vector<16x16xf32>
    %c0_89 = arith.constant 0 : index
    %c0_90 = arith.constant 0 : index
    %c8_91 = arith.constant 8 : index
    %120 = vector.load %arg5[%c0_89, %c0_90, %c8_91] : memref<5x16x26xf32, #tpu.memory_space<vmem>>, vector<1x16x16xf32>
    %121 = vector.shape_cast %120 : vector<1x16x16xf32> to vector<16x16xf32>
    %cst_92 = arith.constant 0.0360007733 : f32
    %122 = vector.broadcast %cst_92 : f32 to vector<16x16xf32>
    %123 = arith.mulf %122, %121 : vector<16x16xf32>
    %124 = arith.addf %119, %123 : vector<16x16xf32>
    %c0_93 = arith.constant 0 : index
    %c0_94 = arith.constant 0 : index
    %c9_95 = arith.constant 9 : index
    %125 = vector.load %arg5[%c0_93, %c0_94, %c9_95] : memref<5x16x26xf32, #tpu.memory_space<vmem>>, vector<1x16x16xf32>
    %126 = vector.shape_cast %125 : vector<1x16x16xf32> to vector<16x16xf32>
    %cst_96 = arith.constant 0.00759875868 : f32
    %127 = vector.broadcast %cst_96 : f32 to vector<16x16xf32>
    %128 = arith.mulf %127, %126 : vector<16x16xf32>
    %129 = arith.addf %124, %128 : vector<16x16xf32>
    %c0_97 = arith.constant 0 : index
    %c0_98 = arith.constant 0 : index
    %c10_99 = arith.constant 10 : index
    %130 = vector.load %arg5[%c0_97, %c0_98, %c10_99] : memref<5x16x26xf32, #tpu.memory_space<vmem>>, vector<1x16x16xf32>
    %131 = vector.shape_cast %130 : vector<1x16x16xf32> to vector<16x16xf32>
    %cst_100 = arith.constant 0.00102838036 : f32
    %132 = vector.broadcast %cst_100 : f32 to vector<16x16xf32>
    %133 = arith.mulf %132, %131 : vector<16x16xf32>
    %134 = arith.addf %129, %133 : vector<16x16xf32>
    %c1_101 = arith.constant 1 : index
    %c0_102 = arith.constant 0 : index
    %c0_103 = arith.constant 0 : index
    %135 = vector.load %arg4[%c1_101, %c0_102, %c0_103] : memref<5x26x16xf32, #tpu.memory_space<vmem>>, vector<1x5x16xf32>
    %136 = vector.shape_cast %135 : vector<1x5x16xf32> to vector<5x16xf32>
    %137 = vector.shape_cast %7 : vector<5x16xf32> to vector<1x5x16xf32>
    tpu.vector_store %arg4[%c1_101, %c0_102, %c0_103], %137 {strides = array<i32>} : memref<5x26x16xf32, #tpu.memory_space<vmem>>, vector<1x5x16xf32>,
    %c1_104 = arith.constant 1 : index
    %c21_105 = arith.constant 21 : index
    %c0_106 = arith.constant 0 : index
    %138 = vector.load %arg4[%c1_104, %c21_105, %c0_106] : memref<5x26x16xf32, #tpu.memory_space<vmem>>, vector<1x5x16xf32>
    %139 = vector.shape_cast %138 : vector<1x5x16xf32> to vector<5x16xf32>
    %140 = vector.shape_cast %7 : vector<5x16xf32> to vector<1x5x16xf32>
    tpu.vector_store %arg4[%c1_104, %c21_105, %c0_106], %140 {strides = array<i32>} : memref<5x26x16xf32, #tpu.memory_space<vmem>>, vector<1x5x16xf32>,
    %c1_107 = arith.constant 1 : index
    %c5_108 = arith.constant 5 : index
    %c0_109 = arith.constant 0 : index
    %141 = vector.load %arg4[%c1_107, %c5_108, %c0_109] : memref<5x26x16xf32, #tpu.memory_space<vmem>>, vector<1x16x16xf32>
    %142 = vector.shape_cast %141 : vector<1x16x16xf32> to vector<16x16xf32>
    %143 = vector.shape_cast %3 : vector<16x16xf32> to vector<1x16x16xf32>
    tpu.vector_store %arg4[%c1_107, %c5_108, %c0_109], %143 {strides = array<i32>} : memref<5x26x16xf32, #tpu.memory_space<vmem>>, vector<1x16x16xf32>,
    %c1_110 = arith.constant 1 : index
    %c0_111 = arith.constant 0 : index
    %c0_112 = arith.constant 0 : index
    %144 = vector.load %arg4[%c1_110, %c0_111, %c0_112] : memref<5x26x16xf32, #tpu.memory_space<vmem>>, vector<1x16x16xf32>
    %145 = vector.shape_cast %144 : vector<1x16x16xf32> to vector<16x16xf32>
    %cst_113 = arith.constant 0.00102838036 : f32
    %146 = vector.broadcast %cst_113 : f32 to vector<16x16xf32>
    %147 = arith.mulf %146, %145 : vector<16x16xf32>
    %c1_114 = arith.constant 1 : index
    %c1_115 = arith.constant 1 : index
    %c0_116 = arith.constant 0 : index
    %148 = vector.load %arg4[%c1_114, %c1_115, %c0_116] : memref<5x26x16xf32, #tpu.memory_space<vmem>>, vector<1x16x16xf32>
    %149 = vector.shape_cast %148 : vector<1x16x16xf32> to vector<16x16xf32>
    %cst_117 = arith.constant 0.00759875868 : f32
    %150 = vector.broadcast %cst_117 : f32 to vector<16x16xf32>
    %151 = arith.mulf %150, %149 : vector<16x16xf32>
    %152 = arith.addf %147, %151 : vector<16x16xf32>
    %c1_118 = arith.constant 1 : index
    %c2_119 = arith.constant 2 : index
    %c0_120 = arith.constant 0 : index
    %153 = vector.load %arg4[%c1_118, %c2_119, %c0_120] : memref<5x26x16xf32, #tpu.memory_space<vmem>>, vector<1x16x16xf32>
    %154 = vector.shape_cast %153 : vector<1x16x16xf32> to vector<16x16xf32>
    %cst_121 = arith.constant 0.0360007733 : f32
    %155 = vector.broadcast %cst_121 : f32 to vector<16x16xf32>
    %156 = arith.mulf %155, %154 : vector<16x16xf32>
    %157 = arith.addf %152, %156 : vector<16x16xf32>
    %c1_122 = arith.constant 1 : index
    %c3_123 = arith.constant 3 : index
    %c0_124 = arith.constant 0 : index
    %158 = vector.load %arg4[%c1_122, %c3_123, %c0_124] : memref<5x26x16xf32, #tpu.memory_space<vmem>>, vector<1x16x16xf32>
    %159 = vector.shape_cast %158 : vector<1x16x16xf32> to vector<16x16xf32>
    %cst_125 = arith.constant 0.109360702 : f32
    %160 = vector.broadcast %cst_125 : f32 to vector<16x16xf32>
    %161 = arith.mulf %160, %159 : vector<16x16xf32>
    %162 = arith.addf %157, %161 : vector<16x16xf32>
    %c1_126 = arith.constant 1 : index
    %c4_127 = arith.constant 4 : index
    %c0_128 = arith.constant 0 : index
    %163 = vector.load %arg4[%c1_126, %c4_127, %c0_128] : memref<5x26x16xf32, #tpu.memory_space<vmem>>, vector<1x16x16xf32>
    %164 = vector.shape_cast %163 : vector<1x16x16xf32> to vector<16x16xf32>
    %cst_129 = arith.constant 0.213005543 : f32
    %165 = vector.broadcast %cst_129 : f32 to vector<16x16xf32>
    %166 = arith.mulf %165, %164 : vector<16x16xf32>
    %167 = arith.addf %162, %166 : vector<16x16xf32>
    %c1_130 = arith.constant 1 : index
    %c5_131 = arith.constant 5 : index
    %c0_132 = arith.constant 0 : index
    %168 = vector.load %arg4[%c1_130, %c5_131, %c0_132] : memref<5x26x16xf32, #tpu.memory_space<vmem>>, vector<1x16x16xf32>
    %169 = vector.shape_cast %168 : vector<1x16x16xf32> to vector<16x16xf32>
    %cst_133 = arith.constant 0.266011745 : f32
    %170 = vector.broadcast %cst_133 : f32 to vector<16x16xf32>
    %171 = arith.mulf %170, %169 : vector<16x16xf32>
    %172 = arith.addf %167, %171 : vector<16x16xf32>
    %c1_134 = arith.constant 1 : index
    %c6_135 = arith.constant 6 : index
    %c0_136 = arith.constant 0 : index
    %173 = vector.load %arg4[%c1_134, %c6_135, %c0_136] : memref<5x26x16xf32, #tpu.memory_space<vmem>>, vector<1x16x16xf32>
    %174 = vector.shape_cast %173 : vector<1x16x16xf32> to vector<16x16xf32>
    %cst_137 = arith.constant 0.213005543 : f32
    %175 = vector.broadcast %cst_137 : f32 to vector<16x16xf32>
    %176 = arith.mulf %175, %174 : vector<16x16xf32>
    %177 = arith.addf %172, %176 : vector<16x16xf32>
    %c1_138 = arith.constant 1 : index
    %c7_139 = arith.constant 7 : index
    %c0_140 = arith.constant 0 : index
    %178 = vector.load %arg4[%c1_138, %c7_139, %c0_140] : memref<5x26x16xf32, #tpu.memory_space<vmem>>, vector<1x16x16xf32>
    %179 = vector.shape_cast %178 : vector<1x16x16xf32> to vector<16x16xf32>
    %cst_141 = arith.constant 0.109360702 : f32
    %180 = vector.broadcast %cst_141 : f32 to vector<16x16xf32>
    %181 = arith.mulf %180, %179 : vector<16x16xf32>
    %182 = arith.addf %177, %181 : vector<16x16xf32>
    %c1_142 = arith.constant 1 : index
    %c8_143 = arith.constant 8 : index
    %c0_144 = arith.constant 0 : index
    %183 = vector.load %arg4[%c1_142, %c8_143, %c0_144] : memref<5x26x16xf32, #tpu.memory_space<vmem>>, vector<1x16x16xf32>
    %184 = vector.shape_cast %183 : vector<1x16x16xf32> to vector<16x16xf32>
    %cst_145 = arith.constant 0.0360007733 : f32
    %185 = vector.broadcast %cst_145 : f32 to vector<16x16xf32>
    %186 = arith.mulf %185, %184 : vector<16x16xf32>
    %187 = arith.addf %182, %186 : vector<16x16xf32>
    %c1_146 = arith.constant 1 : index
    %c9_147 = arith.constant 9 : index
    %c0_148 = arith.constant 0 : index
    %188 = vector.load %arg4[%c1_146, %c9_147, %c0_148] : memref<5x26x16xf32, #tpu.memory_space<vmem>>, vector<1x16x16xf32>
    %189 = vector.shape_cast %188 : vector<1x16x16xf32> to vector<16x16xf32>
    %cst_149 = arith.constant 0.00759875868 : f32
    %190 = vector.broadcast %cst_149 : f32 to vector<16x16xf32>
    %191 = arith.mulf %190, %189 : vector<16x16xf32>
    %192 = arith.addf %187, %191 : vector<16x16xf32>
    %c1_150 = arith.constant 1 : index
    %c10_151 = arith.constant 10 : index
    %c0_152 = arith.constant 0 : index
    %193 = vector.load %arg4[%c1_150, %c10_151, %c0_152] : memref<5x26x16xf32, #tpu.memory_space<vmem>>, vector<1x16x16xf32>
    %194 = vector.shape_cast %193 : vector<1x16x16xf32> to vector<16x16xf32>
    %cst_153 = arith.constant 0.00102838036 : f32
    %195 = vector.broadcast %cst_153 : f32 to vector<16x16xf32>
    %196 = arith.mulf %195, %194 : vector<16x16xf32>
    %197 = arith.addf %192, %196 : vector<16x16xf32>
    %c1_154 = arith.constant 1 : index
    %c0_155 = arith.constant 0 : index
    %c0_156 = arith.constant 0 : index
    %198 = vector.load %arg5[%c1_154, %c0_155, %c0_156] : memref<5x16x26xf32, #tpu.memory_space<vmem>>, vector<1x16x5xf32>
    %199 = vector.shape_cast %198 : vector<1x16x5xf32> to vector<16x5xf32>
    %200 = vector.shape_cast %8 : vector<16x5xf32> to vector<1x16x5xf32>
    tpu.vector_store %arg5[%c1_154, %c0_155, %c0_156], %200 {strides = array<i32>} : memref<5x16x26xf32, #tpu.memory_space<vmem>>, vector<1x16x5xf32>,
    %c1_157 = arith.constant 1 : index
    %c0_158 = arith.constant 0 : index
    %c21_159 = arith.constant 21 : index
    %201 = vector.load %arg5[%c1_157, %c0_158, %c21_159] : memref<5x16x26xf32, #tpu.memory_space<vmem>>, vector<1x16x5xf32>
    %202 = vector.shape_cast %201 : vector<1x16x5xf32> to vector<16x5xf32>
    %203 = vector.shape_cast %8 : vector<16x5xf32> to vector<1x16x5xf32>
    tpu.vector_store %arg5[%c1_157, %c0_158, %c21_159], %203 {strides = array<i32>} : memref<5x16x26xf32, #tpu.memory_space<vmem>>, vector<1x16x5xf32>,
    %c1_160 = arith.constant 1 : index
    %c0_161 = arith.constant 0 : index
    %c5_162 = arith.constant 5 : index
    %204 = vector.load %arg5[%c1_160, %c0_161, %c5_162] : memref<5x16x26xf32, #tpu.memory_space<vmem>>, vector<1x16x16xf32>
    %205 = vector.shape_cast %204 : vector<1x16x16xf32> to vector<16x16xf32>
    %206 = vector.shape_cast %197 : vector<16x16xf32> to vector<1x16x16xf32>
    tpu.vector_store %arg5[%c1_160, %c0_161, %c5_162], %206 {strides = array<i32>} : memref<5x16x26xf32, #tpu.memory_space<vmem>>, vector<1x16x16xf32>,
    %c1_163 = arith.constant 1 : index
    %c0_164 = arith.constant 0 : index
    %c0_165 = arith.constant 0 : index
    %207 = vector.load %arg5[%c1_163, %c0_164, %c0_165] : memref<5x16x26xf32, #tpu.memory_space<vmem>>, vector<1x16x16xf32>
    %208 = vector.shape_cast %207 : vector<1x16x16xf32> to vector<16x16xf32>
    %cst_166 = arith.constant 0.00102838036 : f32
    %209 = vector.broadcast %cst_166 : f32 to vector<16x16xf32>
    %210 = arith.mulf %209, %208 : vector<16x16xf32>
    %c1_167 = arith.constant 1 : index
    %c0_168 = arith.constant 0 : index
    %c1_169 = arith.constant 1 : index
    %211 = vector.load %arg5[%c1_167, %c0_168, %c1_169] : memref<5x16x26xf32, #tpu.memory_space<vmem>>, vector<1x16x16xf32>
    %212 = vector.shape_cast %211 : vector<1x16x16xf32> to vector<16x16xf32>
    %cst_170 = arith.constant 0.00759875868 : f32
    %213 = vector.broadcast %cst_170 : f32 to vector<16x16xf32>
    %214 = arith.mulf %213, %212 : vector<16x16xf32>
    %215 = arith.addf %210, %214 : vector<16x16xf32>
    %c1_171 = arith.constant 1 : index
    %c0_172 = arith.constant 0 : index
    %c2_173 = arith.constant 2 : index
    %216 = vector.load %arg5[%c1_171, %c0_172, %c2_173] : memref<5x16x26xf32, #tpu.memory_space<vmem>>, vector<1x16x16xf32>
    %217 = vector.shape_cast %216 : vector<1x16x16xf32> to vector<16x16xf32>
    %cst_174 = arith.constant 0.0360007733 : f32
    %218 = vector.broadcast %cst_174 : f32 to vector<16x16xf32>
    %219 = arith.mulf %218, %217 : vector<16x16xf32>
    %220 = arith.addf %215, %219 : vector<16x16xf32>
    %c1_175 = arith.constant 1 : index
    %c0_176 = arith.constant 0 : index
    %c3_177 = arith.constant 3 : index
    %221 = vector.load %arg5[%c1_175, %c0_176, %c3_177] : memref<5x16x26xf32, #tpu.memory_space<vmem>>, vector<1x16x16xf32>
    %222 = vector.shape_cast %221 : vector<1x16x16xf32> to vector<16x16xf32>
    %cst_178 = arith.constant 0.109360702 : f32
    %223 = vector.broadcast %cst_178 : f32 to vector<16x16xf32>
    %224 = arith.mulf %223, %222 : vector<16x16xf32>
    %225 = arith.addf %220, %224 : vector<16x16xf32>
    %c1_179 = arith.constant 1 : index
    %c0_180 = arith.constant 0 : index
    %c4_181 = arith.constant 4 : index
    %226 = vector.load %arg5[%c1_179, %c0_180, %c4_181] : memref<5x16x26xf32, #tpu.memory_space<vmem>>, vector<1x16x16xf32>
    %227 = vector.shape_cast %226 : vector<1x16x16xf32> to vector<16x16xf32>
    %cst_182 = arith.constant 0.213005543 : f32
    %228 = vector.broadcast %cst_182 : f32 to vector<16x16xf32>
    %229 = arith.mulf %228, %227 : vector<16x16xf32>
    %230 = arith.addf %225, %229 : vector<16x16xf32>
    %c1_183 = arith.constant 1 : index
    %c0_184 = arith.constant 0 : index
    %c5_185 = arith.constant 5 : index
    %231 = vector.load %arg5[%c1_183, %c0_184, %c5_185] : memref<5x16x26xf32, #tpu.memory_space<vmem>>, vector<1x16x16xf32>
    %232 = vector.shape_cast %231 : vector<1x16x16xf32> to vector<16x16xf32>
    %cst_186 = arith.constant 0.266011745 : f32
    %233 = vector.broadcast %cst_186 : f32 to vector<16x16xf32>
    %234 = arith.mulf %233, %232 : vector<16x16xf32>
    %235 = arith.addf %230, %234 : vector<16x16xf32>
    %c1_187 = arith.constant 1 : index
    %c0_188 = arith.constant 0 : index
    %c6_189 = arith.constant 6 : index
    %236 = vector.load %arg5[%c1_187, %c0_188, %c6_189] : memref<5x16x26xf32, #tpu.memory_space<vmem>>, vector<1x16x16xf32>
    %237 = vector.shape_cast %236 : vector<1x16x16xf32> to vector<16x16xf32>
    %cst_190 = arith.constant 0.213005543 : f32
    %238 = vector.broadcast %cst_190 : f32 to vector<16x16xf32>
    %239 = arith.mulf %238, %237 : vector<16x16xf32>
    %240 = arith.addf %235, %239 : vector<16x16xf32>
    %c1_191 = arith.constant 1 : index
    %c0_192 = arith.constant 0 : index
    %c7_193 = arith.constant 7 : index
    %241 = vector.load %arg5[%c1_191, %c0_192, %c7_193] : memref<5x16x26xf32, #tpu.memory_space<vmem>>, vector<1x16x16xf32>
    %242 = vector.shape_cast %241 : vector<1x16x16xf32> to vector<16x16xf32>
    %cst_194 = arith.constant 0.109360702 : f32
    %243 = vector.broadcast %cst_194 : f32 to vector<16x16xf32>
    %244 = arith.mulf %243, %242 : vector<16x16xf32>
    %245 = arith.addf %240, %244 : vector<16x16xf32>
    %c1_195 = arith.constant 1 : index
    %c0_196 = arith.constant 0 : index
    %c8_197 = arith.constant 8 : index
    %246 = vector.load %arg5[%c1_195, %c0_196, %c8_197] : memref<5x16x26xf32, #tpu.memory_space<vmem>>, vector<1x16x16xf32>
    %247 = vector.shape_cast %246 : vector<1x16x16xf32> to vector<16x16xf32>
    %cst_198 = arith.constant 0.0360007733 : f32
    %248 = vector.broadcast %cst_198 : f32 to vector<16x16xf32>
    %249 = arith.mulf %248, %247 : vector<16x16xf32>
    %250 = arith.addf %245, %249 : vector<16x16xf32>
    %c1_199 = arith.constant 1 : index
    %c0_200 = arith.constant 0 : index
    %c9_201 = arith.constant 9 : index
    %251 = vector.load %arg5[%c1_199, %c0_200, %c9_201] : memref<5x16x26xf32, #tpu.memory_space<vmem>>, vector<1x16x16xf32>
    %252 = vector.shape_cast %251 : vector<1x16x16xf32> to vector<16x16xf32>
    %cst_202 = arith.constant 0.00759875868 : f32
    %253 = vector.broadcast %cst_202 : f32 to vector<16x16xf32>
    %254 = arith.mulf %253, %252 : vector<16x16xf32>
    %255 = arith.addf %250, %254 : vector<16x16xf32>
    %c1_203 = arith.constant 1 : index
    %c0_204 = arith.constant 0 : index
    %c10_205 = arith.constant 10 : index
    %256 = vector.load %arg5[%c1_203, %c0_204, %c10_205] : memref<5x16x26xf32, #tpu.memory_space<vmem>>, vector<1x16x16xf32>
    %257 = vector.shape_cast %256 : vector<1x16x16xf32> to vector<16x16xf32>
    %cst_206 = arith.constant 0.00102838036 : f32
    %258 = vector.broadcast %cst_206 : f32 to vector<16x16xf32>
    %259 = arith.mulf %258, %257 : vector<16x16xf32>
    %260 = arith.addf %255, %259 : vector<16x16xf32>
    %c2_207 = arith.constant 2 : index
    %c0_208 = arith.constant 0 : index
    %c0_209 = arith.constant 0 : index
    %261 = vector.load %arg4[%c2_207, %c0_208, %c0_209] : memref<5x26x16xf32, #tpu.memory_space<vmem>>, vector<1x5x16xf32>
    %262 = vector.shape_cast %261 : vector<1x5x16xf32> to vector<5x16xf32>
    %263 = vector.shape_cast %7 : vector<5x16xf32> to vector<1x5x16xf32>
    tpu.vector_store %arg4[%c2_207, %c0_208, %c0_209], %263 {strides = array<i32>} : memref<5x26x16xf32, #tpu.memory_space<vmem>>, vector<1x5x16xf32>,
    %c2_210 = arith.constant 2 : index
    %c21_211 = arith.constant 21 : index
    %c0_212 = arith.constant 0 : index
    %264 = vector.load %arg4[%c2_210, %c21_211, %c0_212] : memref<5x26x16xf32, #tpu.memory_space<vmem>>, vector<1x5x16xf32>
    %265 = vector.shape_cast %264 : vector<1x5x16xf32> to vector<5x16xf32>
    %266 = vector.shape_cast %7 : vector<5x16xf32> to vector<1x5x16xf32>
    tpu.vector_store %arg4[%c2_210, %c21_211, %c0_212], %266 {strides = array<i32>} : memref<5x26x16xf32, #tpu.memory_space<vmem>>, vector<1x5x16xf32>,
    %c2_213 = arith.constant 2 : index
    %c5_214 = arith.constant 5 : index
    %c0_215 = arith.constant 0 : index
    %267 = vector.load %arg4[%c2_213, %c5_214, %c0_215] : memref<5x26x16xf32, #tpu.memory_space<vmem>>, vector<1x16x16xf32>
    %268 = vector.shape_cast %267 : vector<1x16x16xf32> to vector<16x16xf32>
    %269 = vector.shape_cast %4 : vector<16x16xf32> to vector<1x16x16xf32>
    tpu.vector_store %arg4[%c2_213, %c5_214, %c0_215], %269 {strides = array<i32>} : memref<5x26x16xf32, #tpu.memory_space<vmem>>, vector<1x16x16xf32>,
    %c2_216 = arith.constant 2 : index
    %c0_217 = arith.constant 0 : index
    %c0_218 = arith.constant 0 : index
    %270 = vector.load %arg4[%c2_216, %c0_217, %c0_218] : memref<5x26x16xf32, #tpu.memory_space<vmem>>, vector<1x16x16xf32>
    %271 = vector.shape_cast %270 : vector<1x16x16xf32> to vector<16x16xf32>
    %cst_219 = arith.constant 0.00102838036 : f32
    %272 = vector.broadcast %cst_219 : f32 to vector<16x16xf32>
    %273 = arith.mulf %272, %271 : vector<16x16xf32>
    %c2_220 = arith.constant 2 : index
    %c1_221 = arith.constant 1 : index
    %c0_222 = arith.constant 0 : index
    %274 = vector.load %arg4[%c2_220, %c1_221, %c0_222] : memref<5x26x16xf32, #tpu.memory_space<vmem>>, vector<1x16x16xf32>
    %275 = vector.shape_cast %274 : vector<1x16x16xf32> to vector<16x16xf32>
    %cst_223 = arith.constant 0.00759875868 : f32
    %276 = vector.broadcast %cst_223 : f32 to vector<16x16xf32>
    %277 = arith.mulf %276, %275 : vector<16x16xf32>
    %278 = arith.addf %273, %277 : vector<16x16xf32>
    %c2_224 = arith.constant 2 : index
    %c2_225 = arith.constant 2 : index
    %c0_226 = arith.constant 0 : index
    %279 = vector.load %arg4[%c2_224, %c2_225, %c0_226] : memref<5x26x16xf32, #tpu.memory_space<vmem>>, vector<1x16x16xf32>
    %280 = vector.shape_cast %279 : vector<1x16x16xf32> to vector<16x16xf32>
    %cst_227 = arith.constant 0.0360007733 : f32
    %281 = vector.broadcast %cst_227 : f32 to vector<16x16xf32>
    %282 = arith.mulf %281, %280 : vector<16x16xf32>
    %283 = arith.addf %278, %282 : vector<16x16xf32>
    %c2_228 = arith.constant 2 : index
    %c3_229 = arith.constant 3 : index
    %c0_230 = arith.constant 0 : index
    %284 = vector.load %arg4[%c2_228, %c3_229, %c0_230] : memref<5x26x16xf32, #tpu.memory_space<vmem>>, vector<1x16x16xf32>
    %285 = vector.shape_cast %284 : vector<1x16x16xf32> to vector<16x16xf32>
    %cst_231 = arith.constant 0.109360702 : f32
    %286 = vector.broadcast %cst_231 : f32 to vector<16x16xf32>
    %287 = arith.mulf %286, %285 : vector<16x16xf32>
    %288 = arith.addf %283, %287 : vector<16x16xf32>
    %c2_232 = arith.constant 2 : index
    %c4_233 = arith.constant 4 : index
    %c0_234 = arith.constant 0 : index
    %289 = vector.load %arg4[%c2_232, %c4_233, %c0_234] : memref<5x26x16xf32, #tpu.memory_space<vmem>>, vector<1x16x16xf32>
    %290 = vector.shape_cast %289 : vector<1x16x16xf32> to vector<16x16xf32>
    %cst_235 = arith.constant 0.213005543 : f32
    %291 = vector.broadcast %cst_235 : f32 to vector<16x16xf32>
    %292 = arith.mulf %291, %290 : vector<16x16xf32>
    %293 = arith.addf %288, %292 : vector<16x16xf32>
    %c2_236 = arith.constant 2 : index
    %c5_237 = arith.constant 5 : index
    %c0_238 = arith.constant 0 : index
    %294 = vector.load %arg4[%c2_236, %c5_237, %c0_238] : memref<5x26x16xf32, #tpu.memory_space<vmem>>, vector<1x16x16xf32>
    %295 = vector.shape_cast %294 : vector<1x16x16xf32> to vector<16x16xf32>
    %cst_239 = arith.constant 0.266011745 : f32
    %296 = vector.broadcast %cst_239 : f32 to vector<16x16xf32>
    %297 = arith.mulf %296, %295 : vector<16x16xf32>
    %298 = arith.addf %293, %297 : vector<16x16xf32>
    %c2_240 = arith.constant 2 : index
    %c6_241 = arith.constant 6 : index
    %c0_242 = arith.constant 0 : index
    %299 = vector.load %arg4[%c2_240, %c6_241, %c0_242] : memref<5x26x16xf32, #tpu.memory_space<vmem>>, vector<1x16x16xf32>
    %300 = vector.shape_cast %299 : vector<1x16x16xf32> to vector<16x16xf32>
    %cst_243 = arith.constant 0.213005543 : f32
    %301 = vector.broadcast %cst_243 : f32 to vector<16x16xf32>
    %302 = arith.mulf %301, %300 : vector<16x16xf32>
    %303 = arith.addf %298, %302 : vector<16x16xf32>
    %c2_244 = arith.constant 2 : index
    %c7_245 = arith.constant 7 : index
    %c0_246 = arith.constant 0 : index
    %304 = vector.load %arg4[%c2_244, %c7_245, %c0_246] : memref<5x26x16xf32, #tpu.memory_space<vmem>>, vector<1x16x16xf32>
    %305 = vector.shape_cast %304 : vector<1x16x16xf32> to vector<16x16xf32>
    %cst_247 = arith.constant 0.109360702 : f32
    %306 = vector.broadcast %cst_247 : f32 to vector<16x16xf32>
    %307 = arith.mulf %306, %305 : vector<16x16xf32>
    %308 = arith.addf %303, %307 : vector<16x16xf32>
    %c2_248 = arith.constant 2 : index
    %c8_249 = arith.constant 8 : index
    %c0_250 = arith.constant 0 : index
    %309 = vector.load %arg4[%c2_248, %c8_249, %c0_250] : memref<5x26x16xf32, #tpu.memory_space<vmem>>, vector<1x16x16xf32>
    %310 = vector.shape_cast %309 : vector<1x16x16xf32> to vector<16x16xf32>
    %cst_251 = arith.constant 0.0360007733 : f32
    %311 = vector.broadcast %cst_251 : f32 to vector<16x16xf32>
    %312 = arith.mulf %311, %310 : vector<16x16xf32>
    %313 = arith.addf %308, %312 : vector<16x16xf32>
    %c2_252 = arith.constant 2 : index
    %c9_253 = arith.constant 9 : index
    %c0_254 = arith.constant 0 : index
    %314 = vector.load %arg4[%c2_252, %c9_253, %c0_254] : memref<5x26x16xf32, #tpu.memory_space<vmem>>, vector<1x16x16xf32>
    %315 = vector.shape_cast %314 : vector<1x16x16xf32> to vector<16x16xf32>
    %cst_255 = arith.constant 0.00759875868 : f32
    %316 = vector.broadcast %cst_255 : f32 to vector<16x16xf32>
    %317 = arith.mulf %316, %315 : vector<16x16xf32>
    %318 = arith.addf %313, %317 : vector<16x16xf32>
    %c2_256 = arith.constant 2 : index
    %c10_257 = arith.constant 10 : index
    %c0_258 = arith.constant 0 : index
    %319 = vector.load %arg4[%c2_256, %c10_257, %c0_258] : memref<5x26x16xf32, #tpu.memory_space<vmem>>, vector<1x16x16xf32>
    %320 = vector.shape_cast %319 : vector<1x16x16xf32> to vector<16x16xf32>
    %cst_259 = arith.constant 0.00102838036 : f32
    %321 = vector.broadcast %cst_259 : f32 to vector<16x16xf32>
    %322 = arith.mulf %321, %320 : vector<16x16xf32>
    %323 = arith.addf %318, %322 : vector<16x16xf32>
    %c2_260 = arith.constant 2 : index
    %c0_261 = arith.constant 0 : index
    %c0_262 = arith.constant 0 : index
    %324 = vector.load %arg5[%c2_260, %c0_261, %c0_262] : memref<5x16x26xf32, #tpu.memory_space<vmem>>, vector<1x16x5xf32>
    %325 = vector.shape_cast %324 : vector<1x16x5xf32> to vector<16x5xf32>
    %326 = vector.shape_cast %8 : vector<16x5xf32> to vector<1x16x5xf32>
    tpu.vector_store %arg5[%c2_260, %c0_261, %c0_262], %326 {strides = array<i32>} : memref<5x16x26xf32, #tpu.memory_space<vmem>>, vector<1x16x5xf32>,
    %c2_263 = arith.constant 2 : index
    %c0_264 = arith.constant 0 : index
    %c21_265 = arith.constant 21 : index
    %327 = vector.load %arg5[%c2_263, %c0_264, %c21_265] : memref<5x16x26xf32, #tpu.memory_space<vmem>>, vector<1x16x5xf32>
    %328 = vector.shape_cast %327 : vector<1x16x5xf32> to vector<16x5xf32>
    %329 = vector.shape_cast %8 : vector<16x5xf32> to vector<1x16x5xf32>
    tpu.vector_store %arg5[%c2_263, %c0_264, %c21_265], %329 {strides = array<i32>} : memref<5x16x26xf32, #tpu.memory_space<vmem>>, vector<1x16x5xf32>,
    %c2_266 = arith.constant 2 : index
    %c0_267 = arith.constant 0 : index
    %c5_268 = arith.constant 5 : index
    %330 = vector.load %arg5[%c2_266, %c0_267, %c5_268] : memref<5x16x26xf32, #tpu.memory_space<vmem>>, vector<1x16x16xf32>
    %331 = vector.shape_cast %330 : vector<1x16x16xf32> to vector<16x16xf32>
    %332 = vector.shape_cast %323 : vector<16x16xf32> to vector<1x16x16xf32>
    tpu.vector_store %arg5[%c2_266, %c0_267, %c5_268], %332 {strides = array<i32>} : memref<5x16x26xf32, #tpu.memory_space<vmem>>, vector<1x16x16xf32>,
    %c2_269 = arith.constant 2 : index
    %c0_270 = arith.constant 0 : index
    %c0_271 = arith.constant 0 : index
    %333 = vector.load %arg5[%c2_269, %c0_270, %c0_271] : memref<5x16x26xf32, #tpu.memory_space<vmem>>, vector<1x16x16xf32>
    %334 = vector.shape_cast %333 : vector<1x16x16xf32> to vector<16x16xf32>
    %cst_272 = arith.constant 0.00102838036 : f32
    %335 = vector.broadcast %cst_272 : f32 to vector<16x16xf32>
    %336 = arith.mulf %335, %334 : vector<16x16xf32>
    %c2_273 = arith.constant 2 : index
    %c0_274 = arith.constant 0 : index
    %c1_275 = arith.constant 1 : index
    %337 = vector.load %arg5[%c2_273, %c0_274, %c1_275] : memref<5x16x26xf32, #tpu.memory_space<vmem>>, vector<1x16x16xf32>
    %338 = vector.shape_cast %337 : vector<1x16x16xf32> to vector<16x16xf32>
    %cst_276 = arith.constant 0.00759875868 : f32
    %339 = vector.broadcast %cst_276 : f32 to vector<16x16xf32>
    %340 = arith.mulf %339, %338 : vector<16x16xf32>
    %341 = arith.addf %336, %340 : vector<16x16xf32>
    %c2_277 = arith.constant 2 : index
    %c0_278 = arith.constant 0 : index
    %c2_279 = arith.constant 2 : index
    %342 = vector.load %arg5[%c2_277, %c0_278, %c2_279] : memref<5x16x26xf32, #tpu.memory_space<vmem>>, vector<1x16x16xf32>
    %343 = vector.shape_cast %342 : vector<1x16x16xf32> to vector<16x16xf32>
    %cst_280 = arith.constant 0.0360007733 : f32
    %344 = vector.broadcast %cst_280 : f32 to vector<16x16xf32>
    %345 = arith.mulf %344, %343 : vector<16x16xf32>
    %346 = arith.addf %341, %345 : vector<16x16xf32>
    %c2_281 = arith.constant 2 : index
    %c0_282 = arith.constant 0 : index
    %c3_283 = arith.constant 3 : index
    %347 = vector.load %arg5[%c2_281, %c0_282, %c3_283] : memref<5x16x26xf32, #tpu.memory_space<vmem>>, vector<1x16x16xf32>
    %348 = vector.shape_cast %347 : vector<1x16x16xf32> to vector<16x16xf32>
    %cst_284 = arith.constant 0.109360702 : f32
    %349 = vector.broadcast %cst_284 : f32 to vector<16x16xf32>
    %350 = arith.mulf %349, %348 : vector<16x16xf32>
    %351 = arith.addf %346, %350 : vector<16x16xf32>
    %c2_285 = arith.constant 2 : index
    %c0_286 = arith.constant 0 : index
    %c4_287 = arith.constant 4 : index
    %352 = vector.load %arg5[%c2_285, %c0_286, %c4_287] : memref<5x16x26xf32, #tpu.memory_space<vmem>>, vector<1x16x16xf32>
    %353 = vector.shape_cast %352 : vector<1x16x16xf32> to vector<16x16xf32>
    %cst_288 = arith.constant 0.213005543 : f32
    %354 = vector.broadcast %cst_288 : f32 to vector<16x16xf32>
    %355 = arith.mulf %354, %353 : vector<16x16xf32>
    %356 = arith.addf %351, %355 : vector<16x16xf32>
    %c2_289 = arith.constant 2 : index
    %c0_290 = arith.constant 0 : index
    %c5_291 = arith.constant 5 : index
    %357 = vector.load %arg5[%c2_289, %c0_290, %c5_291] : memref<5x16x26xf32, #tpu.memory_space<vmem>>, vector<1x16x16xf32>
    %358 = vector.shape_cast %357 : vector<1x16x16xf32> to vector<16x16xf32>
    %cst_292 = arith.constant 0.266011745 : f32
    %359 = vector.broadcast %cst_292 : f32 to vector<16x16xf32>
    %360 = arith.mulf %359, %358 : vector<16x16xf32>
    %361 = arith.addf %356, %360 : vector<16x16xf32>
    %c2_293 = arith.constant 2 : index
    %c0_294 = arith.constant 0 : index
    %c6_295 = arith.constant 6 : index
    %362 = vector.load %arg5[%c2_293, %c0_294, %c6_295] : memref<5x16x26xf32, #tpu.memory_space<vmem>>, vector<1x16x16xf32>
    %363 = vector.shape_cast %362 : vector<1x16x16xf32> to vector<16x16xf32>
    %cst_296 = arith.constant 0.213005543 : f32
    %364 = vector.broadcast %cst_296 : f32 to vector<16x16xf32>
    %365 = arith.mulf %364, %363 : vector<16x16xf32>
    %366 = arith.addf %361, %365 : vector<16x16xf32>
    %c2_297 = arith.constant 2 : index
    %c0_298 = arith.constant 0 : index
    %c7_299 = arith.constant 7 : index
    %367 = vector.load %arg5[%c2_297, %c0_298, %c7_299] : memref<5x16x26xf32, #tpu.memory_space<vmem>>, vector<1x16x16xf32>
    %368 = vector.shape_cast %367 : vector<1x16x16xf32> to vector<16x16xf32>
    %cst_300 = arith.constant 0.109360702 : f32
    %369 = vector.broadcast %cst_300 : f32 to vector<16x16xf32>
    %370 = arith.mulf %369, %368 : vector<16x16xf32>
    %371 = arith.addf %366, %370 : vector<16x16xf32>
    %c2_301 = arith.constant 2 : index
    %c0_302 = arith.constant 0 : index
    %c8_303 = arith.constant 8 : index
    %372 = vector.load %arg5[%c2_301, %c0_302, %c8_303] : memref<5x16x26xf32, #tpu.memory_space<vmem>>, vector<1x16x16xf32>
    %373 = vector.shape_cast %372 : vector<1x16x16xf32> to vector<16x16xf32>
    %cst_304 = arith.constant 0.0360007733 : f32
    %374 = vector.broadcast %cst_304 : f32 to vector<16x16xf32>
    %375 = arith.mulf %374, %373 : vector<16x16xf32>
    %376 = arith.addf %371, %375 : vector<16x16xf32>
    %c2_305 = arith.constant 2 : index
    %c0_306 = arith.constant 0 : index
    %c9_307 = arith.constant 9 : index
    %377 = vector.load %arg5[%c2_305, %c0_306, %c9_307] : memref<5x16x26xf32, #tpu.memory_space<vmem>>, vector<1x16x16xf32>
    %378 = vector.shape_cast %377 : vector<1x16x16xf32> to vector<16x16xf32>
    %cst_308 = arith.constant 0.00759875868 : f32
    %379 = vector.broadcast %cst_308 : f32 to vector<16x16xf32>
    %380 = arith.mulf %379, %378 : vector<16x16xf32>
    %381 = arith.addf %376, %380 : vector<16x16xf32>
    %c2_309 = arith.constant 2 : index
    %c0_310 = arith.constant 0 : index
    %c10_311 = arith.constant 10 : index
    %382 = vector.load %arg5[%c2_309, %c0_310, %c10_311] : memref<5x16x26xf32, #tpu.memory_space<vmem>>, vector<1x16x16xf32>
    %383 = vector.shape_cast %382 : vector<1x16x16xf32> to vector<16x16xf32>
    %cst_312 = arith.constant 0.00102838036 : f32
    %384 = vector.broadcast %cst_312 : f32 to vector<16x16xf32>
    %385 = arith.mulf %384, %383 : vector<16x16xf32>
    %386 = arith.addf %381, %385 : vector<16x16xf32>
    %c3_313 = arith.constant 3 : index
    %c0_314 = arith.constant 0 : index
    %c0_315 = arith.constant 0 : index
    %387 = vector.load %arg4[%c3_313, %c0_314, %c0_315] : memref<5x26x16xf32, #tpu.memory_space<vmem>>, vector<1x5x16xf32>
    %388 = vector.shape_cast %387 : vector<1x5x16xf32> to vector<5x16xf32>
    %389 = vector.shape_cast %7 : vector<5x16xf32> to vector<1x5x16xf32>
    tpu.vector_store %arg4[%c3_313, %c0_314, %c0_315], %389 {strides = array<i32>} : memref<5x26x16xf32, #tpu.memory_space<vmem>>, vector<1x5x16xf32>,
    %c3_316 = arith.constant 3 : index
    %c21_317 = arith.constant 21 : index
    %c0_318 = arith.constant 0 : index
    %390 = vector.load %arg4[%c3_316, %c21_317, %c0_318] : memref<5x26x16xf32, #tpu.memory_space<vmem>>, vector<1x5x16xf32>
    %391 = vector.shape_cast %390 : vector<1x5x16xf32> to vector<5x16xf32>
    %392 = vector.shape_cast %7 : vector<5x16xf32> to vector<1x5x16xf32>
    tpu.vector_store %arg4[%c3_316, %c21_317, %c0_318], %392 {strides = array<i32>} : memref<5x26x16xf32, #tpu.memory_space<vmem>>, vector<1x5x16xf32>,
    %c3_319 = arith.constant 3 : index
    %c5_320 = arith.constant 5 : index
    %c0_321 = arith.constant 0 : index
    %393 = vector.load %arg4[%c3_319, %c5_320, %c0_321] : memref<5x26x16xf32, #tpu.memory_space<vmem>>, vector<1x16x16xf32>
    %394 = vector.shape_cast %393 : vector<1x16x16xf32> to vector<16x16xf32>
    %395 = vector.shape_cast %5 : vector<16x16xf32> to vector<1x16x16xf32>
    tpu.vector_store %arg4[%c3_319, %c5_320, %c0_321], %395 {strides = array<i32>} : memref<5x26x16xf32, #tpu.memory_space<vmem>>, vector<1x16x16xf32>,
    %c3_322 = arith.constant 3 : index
    %c0_323 = arith.constant 0 : index
    %c0_324 = arith.constant 0 : index
    %396 = vector.load %arg4[%c3_322, %c0_323, %c0_324] : memref<5x26x16xf32, #tpu.memory_space<vmem>>, vector<1x16x16xf32>
    %397 = vector.shape_cast %396 : vector<1x16x16xf32> to vector<16x16xf32>
    %cst_325 = arith.constant 0.00102838036 : f32
    %398 = vector.broadcast %cst_325 : f32 to vector<16x16xf32>
    %399 = arith.mulf %398, %397 : vector<16x16xf32>
    %c3_326 = arith.constant 3 : index
    %c1_327 = arith.constant 1 : index
    %c0_328 = arith.constant 0 : index
    %400 = vector.load %arg4[%c3_326, %c1_327, %c0_328] : memref<5x26x16xf32, #tpu.memory_space<vmem>>, vector<1x16x16xf32>
    %401 = vector.shape_cast %400 : vector<1x16x16xf32> to vector<16x16xf32>
    %cst_329 = arith.constant 0.00759875868 : f32
    %402 = vector.broadcast %cst_329 : f32 to vector<16x16xf32>
    %403 = arith.mulf %402, %401 : vector<16x16xf32>
    %404 = arith.addf %399, %403 : vector<16x16xf32>
    %c3_330 = arith.constant 3 : index
    %c2_331 = arith.constant 2 : index
    %c0_332 = arith.constant 0 : index
    %405 = vector.load %arg4[%c3_330, %c2_331, %c0_332] : memref<5x26x16xf32, #tpu.memory_space<vmem>>, vector<1x16x16xf32>
    %406 = vector.shape_cast %405 : vector<1x16x16xf32> to vector<16x16xf32>
    %cst_333 = arith.constant 0.0360007733 : f32
    %407 = vector.broadcast %cst_333 : f32 to vector<16x16xf32>
    %408 = arith.mulf %407, %406 : vector<16x16xf32>
    %409 = arith.addf %404, %408 : vector<16x16xf32>
    %c3_334 = arith.constant 3 : index
    %c3_335 = arith.constant 3 : index
    %c0_336 = arith.constant 0 : index
    %410 = vector.load %arg4[%c3_334, %c3_335, %c0_336] : memref<5x26x16xf32, #tpu.memory_space<vmem>>, vector<1x16x16xf32>
    %411 = vector.shape_cast %410 : vector<1x16x16xf32> to vector<16x16xf32>
    %cst_337 = arith.constant 0.109360702 : f32
    %412 = vector.broadcast %cst_337 : f32 to vector<16x16xf32>
    %413 = arith.mulf %412, %411 : vector<16x16xf32>
    %414 = arith.addf %409, %413 : vector<16x16xf32>
    %c3_338 = arith.constant 3 : index
    %c4_339 = arith.constant 4 : index
    %c0_340 = arith.constant 0 : index
    %415 = vector.load %arg4[%c3_338, %c4_339, %c0_340] : memref<5x26x16xf32, #tpu.memory_space<vmem>>, vector<1x16x16xf32>
    %416 = vector.shape_cast %415 : vector<1x16x16xf32> to vector<16x16xf32>
    %cst_341 = arith.constant 0.213005543 : f32
    %417 = vector.broadcast %cst_341 : f32 to vector<16x16xf32>
    %418 = arith.mulf %417, %416 : vector<16x16xf32>
    %419 = arith.addf %414, %418 : vector<16x16xf32>
    %c3_342 = arith.constant 3 : index
    %c5_343 = arith.constant 5 : index
    %c0_344 = arith.constant 0 : index
    %420 = vector.load %arg4[%c3_342, %c5_343, %c0_344] : memref<5x26x16xf32, #tpu.memory_space<vmem>>, vector<1x16x16xf32>
    %421 = vector.shape_cast %420 : vector<1x16x16xf32> to vector<16x16xf32>
    %cst_345 = arith.constant 0.266011745 : f32
    %422 = vector.broadcast %cst_345 : f32 to vector<16x16xf32>
    %423 = arith.mulf %422, %421 : vector<16x16xf32>
    %424 = arith.addf %419, %423 : vector<16x16xf32>
    %c3_346 = arith.constant 3 : index
    %c6_347 = arith.constant 6 : index
    %c0_348 = arith.constant 0 : index
    %425 = vector.load %arg4[%c3_346, %c6_347, %c0_348] : memref<5x26x16xf32, #tpu.memory_space<vmem>>, vector<1x16x16xf32>
    %426 = vector.shape_cast %425 : vector<1x16x16xf32> to vector<16x16xf32>
    %cst_349 = arith.constant 0.213005543 : f32
    %427 = vector.broadcast %cst_349 : f32 to vector<16x16xf32>
    %428 = arith.mulf %427, %426 : vector<16x16xf32>
    %429 = arith.addf %424, %428 : vector<16x16xf32>
    %c3_350 = arith.constant 3 : index
    %c7_351 = arith.constant 7 : index
    %c0_352 = arith.constant 0 : index
    %430 = vector.load %arg4[%c3_350, %c7_351, %c0_352] : memref<5x26x16xf32, #tpu.memory_space<vmem>>, vector<1x16x16xf32>
    %431 = vector.shape_cast %430 : vector<1x16x16xf32> to vector<16x16xf32>
    %cst_353 = arith.constant 0.109360702 : f32
    %432 = vector.broadcast %cst_353 : f32 to vector<16x16xf32>
    %433 = arith.mulf %432, %431 : vector<16x16xf32>
    %434 = arith.addf %429, %433 : vector<16x16xf32>
    %c3_354 = arith.constant 3 : index
    %c8_355 = arith.constant 8 : index
    %c0_356 = arith.constant 0 : index
    %435 = vector.load %arg4[%c3_354, %c8_355, %c0_356] : memref<5x26x16xf32, #tpu.memory_space<vmem>>, vector<1x16x16xf32>
    %436 = vector.shape_cast %435 : vector<1x16x16xf32> to vector<16x16xf32>
    %cst_357 = arith.constant 0.0360007733 : f32
    %437 = vector.broadcast %cst_357 : f32 to vector<16x16xf32>
    %438 = arith.mulf %437, %436 : vector<16x16xf32>
    %439 = arith.addf %434, %438 : vector<16x16xf32>
    %c3_358 = arith.constant 3 : index
    %c9_359 = arith.constant 9 : index
    %c0_360 = arith.constant 0 : index
    %440 = vector.load %arg4[%c3_358, %c9_359, %c0_360] : memref<5x26x16xf32, #tpu.memory_space<vmem>>, vector<1x16x16xf32>
    %441 = vector.shape_cast %440 : vector<1x16x16xf32> to vector<16x16xf32>
    %cst_361 = arith.constant 0.00759875868 : f32
    %442 = vector.broadcast %cst_361 : f32 to vector<16x16xf32>
    %443 = arith.mulf %442, %441 : vector<16x16xf32>
    %444 = arith.addf %439, %443 : vector<16x16xf32>
    %c3_362 = arith.constant 3 : index
    %c10_363 = arith.constant 10 : index
    %c0_364 = arith.constant 0 : index
    %445 = vector.load %arg4[%c3_362, %c10_363, %c0_364] : memref<5x26x16xf32, #tpu.memory_space<vmem>>, vector<1x16x16xf32>
    %446 = vector.shape_cast %445 : vector<1x16x16xf32> to vector<16x16xf32>
    %cst_365 = arith.constant 0.00102838036 : f32
    %447 = vector.broadcast %cst_365 : f32 to vector<16x16xf32>
    %448 = arith.mulf %447, %446 : vector<16x16xf32>
    %449 = arith.addf %444, %448 : vector<16x16xf32>
    %c3_366 = arith.constant 3 : index
    %c0_367 = arith.constant 0 : index
    %c0_368 = arith.constant 0 : index
    %450 = vector.load %arg5[%c3_366, %c0_367, %c0_368] : memref<5x16x26xf32, #tpu.memory_space<vmem>>, vector<1x16x5xf32>
    %451 = vector.shape_cast %450 : vector<1x16x5xf32> to vector<16x5xf32>
    %452 = vector.shape_cast %8 : vector<16x5xf32> to vector<1x16x5xf32>
    tpu.vector_store %arg5[%c3_366, %c0_367, %c0_368], %452 {strides = array<i32>} : memref<5x16x26xf32, #tpu.memory_space<vmem>>, vector<1x16x5xf32>,
    %c3_369 = arith.constant 3 : index
    %c0_370 = arith.constant 0 : index
    %c21_371 = arith.constant 21 : index
    %453 = vector.load %arg5[%c3_369, %c0_370, %c21_371] : memref<5x16x26xf32, #tpu.memory_space<vmem>>, vector<1x16x5xf32>
    %454 = vector.shape_cast %453 : vector<1x16x5xf32> to vector<16x5xf32>
    %455 = vector.shape_cast %8 : vector<16x5xf32> to vector<1x16x5xf32>
    tpu.vector_store %arg5[%c3_369, %c0_370, %c21_371], %455 {strides = array<i32>} : memref<5x16x26xf32, #tpu.memory_space<vmem>>, vector<1x16x5xf32>,
    %c3_372 = arith.constant 3 : index
    %c0_373 = arith.constant 0 : index
    %c5_374 = arith.constant 5 : index
    %456 = vector.load %arg5[%c3_372, %c0_373, %c5_374] : memref<5x16x26xf32, #tpu.memory_space<vmem>>, vector<1x16x16xf32>
    %457 = vector.shape_cast %456 : vector<1x16x16xf32> to vector<16x16xf32>
    %458 = vector.shape_cast %449 : vector<16x16xf32> to vector<1x16x16xf32>
    tpu.vector_store %arg5[%c3_372, %c0_373, %c5_374], %458 {strides = array<i32>} : memref<5x16x26xf32, #tpu.memory_space<vmem>>, vector<1x16x16xf32>,
    %c3_375 = arith.constant 3 : index
    %c0_376 = arith.constant 0 : index
    %c0_377 = arith.constant 0 : index
    %459 = vector.load %arg5[%c3_375, %c0_376, %c0_377] : memref<5x16x26xf32, #tpu.memory_space<vmem>>, vector<1x16x16xf32>
    %460 = vector.shape_cast %459 : vector<1x16x16xf32> to vector<16x16xf32>
    %cst_378 = arith.constant 0.00102838036 : f32
    %461 = vector.broadcast %cst_378 : f32 to vector<16x16xf32>
    %462 = arith.mulf %461, %460 : vector<16x16xf32>
    %c3_379 = arith.constant 3 : index
    %c0_380 = arith.constant 0 : index
    %c1_381 = arith.constant 1 : index
    %463 = vector.load %arg5[%c3_379, %c0_380, %c1_381] : memref<5x16x26xf32, #tpu.memory_space<vmem>>, vector<1x16x16xf32>
    %464 = vector.shape_cast %463 : vector<1x16x16xf32> to vector<16x16xf32>
    %cst_382 = arith.constant 0.00759875868 : f32
    %465 = vector.broadcast %cst_382 : f32 to vector<16x16xf32>
    %466 = arith.mulf %465, %464 : vector<16x16xf32>
    %467 = arith.addf %462, %466 : vector<16x16xf32>
    %c3_383 = arith.constant 3 : index
    %c0_384 = arith.constant 0 : index
    %c2_385 = arith.constant 2 : index
    %468 = vector.load %arg5[%c3_383, %c0_384, %c2_385] : memref<5x16x26xf32, #tpu.memory_space<vmem>>, vector<1x16x16xf32>
    %469 = vector.shape_cast %468 : vector<1x16x16xf32> to vector<16x16xf32>
    %cst_386 = arith.constant 0.0360007733 : f32
    %470 = vector.broadcast %cst_386 : f32 to vector<16x16xf32>
    %471 = arith.mulf %470, %469 : vector<16x16xf32>
    %472 = arith.addf %467, %471 : vector<16x16xf32>
    %c3_387 = arith.constant 3 : index
    %c0_388 = arith.constant 0 : index
    %c3_389 = arith.constant 3 : index
    %473 = vector.load %arg5[%c3_387, %c0_388, %c3_389] : memref<5x16x26xf32, #tpu.memory_space<vmem>>, vector<1x16x16xf32>
    %474 = vector.shape_cast %473 : vector<1x16x16xf32> to vector<16x16xf32>
    %cst_390 = arith.constant 0.109360702 : f32
    %475 = vector.broadcast %cst_390 : f32 to vector<16x16xf32>
    %476 = arith.mulf %475, %474 : vector<16x16xf32>
    %477 = arith.addf %472, %476 : vector<16x16xf32>
    %c3_391 = arith.constant 3 : index
    %c0_392 = arith.constant 0 : index
    %c4_393 = arith.constant 4 : index
    %478 = vector.load %arg5[%c3_391, %c0_392, %c4_393] : memref<5x16x26xf32, #tpu.memory_space<vmem>>, vector<1x16x16xf32>
    %479 = vector.shape_cast %478 : vector<1x16x16xf32> to vector<16x16xf32>
    %cst_394 = arith.constant 0.213005543 : f32
    %480 = vector.broadcast %cst_394 : f32 to vector<16x16xf32>
    %481 = arith.mulf %480, %479 : vector<16x16xf32>
    %482 = arith.addf %477, %481 : vector<16x16xf32>
    %c3_395 = arith.constant 3 : index
    %c0_396 = arith.constant 0 : index
    %c5_397 = arith.constant 5 : index
    %483 = vector.load %arg5[%c3_395, %c0_396, %c5_397] : memref<5x16x26xf32, #tpu.memory_space<vmem>>, vector<1x16x16xf32>
    %484 = vector.shape_cast %483 : vector<1x16x16xf32> to vector<16x16xf32>
    %cst_398 = arith.constant 0.266011745 : f32
    %485 = vector.broadcast %cst_398 : f32 to vector<16x16xf32>
    %486 = arith.mulf %485, %484 : vector<16x16xf32>
    %487 = arith.addf %482, %486 : vector<16x16xf32>
    %c3_399 = arith.constant 3 : index
    %c0_400 = arith.constant 0 : index
    %c6_401 = arith.constant 6 : index
    %488 = vector.load %arg5[%c3_399, %c0_400, %c6_401] : memref<5x16x26xf32, #tpu.memory_space<vmem>>, vector<1x16x16xf32>
    %489 = vector.shape_cast %488 : vector<1x16x16xf32> to vector<16x16xf32>
    %cst_402 = arith.constant 0.213005543 : f32
    %490 = vector.broadcast %cst_402 : f32 to vector<16x16xf32>
    %491 = arith.mulf %490, %489 : vector<16x16xf32>
    %492 = arith.addf %487, %491 : vector<16x16xf32>
    %c3_403 = arith.constant 3 : index
    %c0_404 = arith.constant 0 : index
    %c7_405 = arith.constant 7 : index
    %493 = vector.load %arg5[%c3_403, %c0_404, %c7_405] : memref<5x16x26xf32, #tpu.memory_space<vmem>>, vector<1x16x16xf32>
    %494 = vector.shape_cast %493 : vector<1x16x16xf32> to vector<16x16xf32>
    %cst_406 = arith.constant 0.109360702 : f32
    %495 = vector.broadcast %cst_406 : f32 to vector<16x16xf32>
    %496 = arith.mulf %495, %494 : vector<16x16xf32>
    %497 = arith.addf %492, %496 : vector<16x16xf32>
    %c3_407 = arith.constant 3 : index
    %c0_408 = arith.constant 0 : index
    %c8_409 = arith.constant 8 : index
    %498 = vector.load %arg5[%c3_407, %c0_408, %c8_409] : memref<5x16x26xf32, #tpu.memory_space<vmem>>, vector<1x16x16xf32>
    %499 = vector.shape_cast %498 : vector<1x16x16xf32> to vector<16x16xf32>
    %cst_410 = arith.constant 0.0360007733 : f32
    %500 = vector.broadcast %cst_410 : f32 to vector<16x16xf32>
    %501 = arith.mulf %500, %499 : vector<16x16xf32>
    %502 = arith.addf %497, %501 : vector<16x16xf32>
    %c3_411 = arith.constant 3 : index
    %c0_412 = arith.constant 0 : index
    %c9_413 = arith.constant 9 : index
    %503 = vector.load %arg5[%c3_411, %c0_412, %c9_413] : memref<5x16x26xf32, #tpu.memory_space<vmem>>, vector<1x16x16xf32>
    %504 = vector.shape_cast %503 : vector<1x16x16xf32> to vector<16x16xf32>
    %cst_414 = arith.constant 0.00759875868 : f32
    %505 = vector.broadcast %cst_414 : f32 to vector<16x16xf32>
    %506 = arith.mulf %505, %504 : vector<16x16xf32>
    %507 = arith.addf %502, %506 : vector<16x16xf32>
    %c3_415 = arith.constant 3 : index
    %c0_416 = arith.constant 0 : index
    %c10_417 = arith.constant 10 : index
    %508 = vector.load %arg5[%c3_415, %c0_416, %c10_417] : memref<5x16x26xf32, #tpu.memory_space<vmem>>, vector<1x16x16xf32>
    %509 = vector.shape_cast %508 : vector<1x16x16xf32> to vector<16x16xf32>
    %cst_418 = arith.constant 0.00102838036 : f32
    %510 = vector.broadcast %cst_418 : f32 to vector<16x16xf32>
    %511 = arith.mulf %510, %509 : vector<16x16xf32>
    %512 = arith.addf %507, %511 : vector<16x16xf32>
    %c4_419 = arith.constant 4 : index
    %c0_420 = arith.constant 0 : index
    %c0_421 = arith.constant 0 : index
    %513 = vector.load %arg4[%c4_419, %c0_420, %c0_421] : memref<5x26x16xf32, #tpu.memory_space<vmem>>, vector<1x5x16xf32>
    %514 = vector.shape_cast %513 : vector<1x5x16xf32> to vector<5x16xf32>
    %515 = vector.shape_cast %7 : vector<5x16xf32> to vector<1x5x16xf32>
    tpu.vector_store %arg4[%c4_419, %c0_420, %c0_421], %515 {strides = array<i32>} : memref<5x26x16xf32, #tpu.memory_space<vmem>>, vector<1x5x16xf32>,
    %c4_422 = arith.constant 4 : index
    %c21_423 = arith.constant 21 : index
    %c0_424 = arith.constant 0 : index
    %516 = vector.load %arg4[%c4_422, %c21_423, %c0_424] : memref<5x26x16xf32, #tpu.memory_space<vmem>>, vector<1x5x16xf32>
    %517 = vector.shape_cast %516 : vector<1x5x16xf32> to vector<5x16xf32>
    %518 = vector.shape_cast %7 : vector<5x16xf32> to vector<1x5x16xf32>
    tpu.vector_store %arg4[%c4_422, %c21_423, %c0_424], %518 {strides = array<i32>} : memref<5x26x16xf32, #tpu.memory_space<vmem>>, vector<1x5x16xf32>,
    %c4_425 = arith.constant 4 : index
    %c5_426 = arith.constant 5 : index
    %c0_427 = arith.constant 0 : index
    %519 = vector.load %arg4[%c4_425, %c5_426, %c0_427] : memref<5x26x16xf32, #tpu.memory_space<vmem>>, vector<1x16x16xf32>
    %520 = vector.shape_cast %519 : vector<1x16x16xf32> to vector<16x16xf32>
    %521 = vector.shape_cast %6 : vector<16x16xf32> to vector<1x16x16xf32>
    tpu.vector_store %arg4[%c4_425, %c5_426, %c0_427], %521 {strides = array<i32>} : memref<5x26x16xf32, #tpu.memory_space<vmem>>, vector<1x16x16xf32>,
    %c4_428 = arith.constant 4 : index
    %c0_429 = arith.constant 0 : index
    %c0_430 = arith.constant 0 : index
    %522 = vector.load %arg4[%c4_428, %c0_429, %c0_430] : memref<5x26x16xf32, #tpu.memory_space<vmem>>, vector<1x16x16xf32>
    %523 = vector.shape_cast %522 : vector<1x16x16xf32> to vector<16x16xf32>
    %cst_431 = arith.constant 0.00102838036 : f32
    %524 = vector.broadcast %cst_431 : f32 to vector<16x16xf32>
    %525 = arith.mulf %524, %523 : vector<16x16xf32>
    %c4_432 = arith.constant 4 : index
    %c1_433 = arith.constant 1 : index
    %c0_434 = arith.constant 0 : index
    %526 = vector.load %arg4[%c4_432, %c1_433, %c0_434] : memref<5x26x16xf32, #tpu.memory_space<vmem>>, vector<1x16x16xf32>
    %527 = vector.shape_cast %526 : vector<1x16x16xf32> to vector<16x16xf32>
    %cst_435 = arith.constant 0.00759875868 : f32
    %528 = vector.broadcast %cst_435 : f32 to vector<16x16xf32>
    %529 = arith.mulf %528, %527 : vector<16x16xf32>
    %530 = arith.addf %525, %529 : vector<16x16xf32>
    %c4_436 = arith.constant 4 : index
    %c2_437 = arith.constant 2 : index
    %c0_438 = arith.constant 0 : index
    %531 = vector.load %arg4[%c4_436, %c2_437, %c0_438] : memref<5x26x16xf32, #tpu.memory_space<vmem>>, vector<1x16x16xf32>
    %532 = vector.shape_cast %531 : vector<1x16x16xf32> to vector<16x16xf32>
    %cst_439 = arith.constant 0.0360007733 : f32
    %533 = vector.broadcast %cst_439 : f32 to vector<16x16xf32>
    %534 = arith.mulf %533, %532 : vector<16x16xf32>
    %535 = arith.addf %530, %534 : vector<16x16xf32>
    %c4_440 = arith.constant 4 : index
    %c3_441 = arith.constant 3 : index
    %c0_442 = arith.constant 0 : index
    %536 = vector.load %arg4[%c4_440, %c3_441, %c0_442] : memref<5x26x16xf32, #tpu.memory_space<vmem>>, vector<1x16x16xf32>
    %537 = vector.shape_cast %536 : vector<1x16x16xf32> to vector<16x16xf32>
    %cst_443 = arith.constant 0.109360702 : f32
    %538 = vector.broadcast %cst_443 : f32 to vector<16x16xf32>
    %539 = arith.mulf %538, %537 : vector<16x16xf32>
    %540 = arith.addf %535, %539 : vector<16x16xf32>
    %c4_444 = arith.constant 4 : index
    %c4_445 = arith.constant 4 : index
    %c0_446 = arith.constant 0 : index
    %541 = vector.load %arg4[%c4_444, %c4_445, %c0_446] : memref<5x26x16xf32, #tpu.memory_space<vmem>>, vector<1x16x16xf32>
    %542 = vector.shape_cast %541 : vector<1x16x16xf32> to vector<16x16xf32>
    %cst_447 = arith.constant 0.213005543 : f32
    %543 = vector.broadcast %cst_447 : f32 to vector<16x16xf32>
    %544 = arith.mulf %543, %542 : vector<16x16xf32>
    %545 = arith.addf %540, %544 : vector<16x16xf32>
    %c4_448 = arith.constant 4 : index
    %c5_449 = arith.constant 5 : index
    %c0_450 = arith.constant 0 : index
    %546 = vector.load %arg4[%c4_448, %c5_449, %c0_450] : memref<5x26x16xf32, #tpu.memory_space<vmem>>, vector<1x16x16xf32>
    %547 = vector.shape_cast %546 : vector<1x16x16xf32> to vector<16x16xf32>
    %cst_451 = arith.constant 0.266011745 : f32
    %548 = vector.broadcast %cst_451 : f32 to vector<16x16xf32>
    %549 = arith.mulf %548, %547 : vector<16x16xf32>
    %550 = arith.addf %545, %549 : vector<16x16xf32>
    %c4_452 = arith.constant 4 : index
    %c6_453 = arith.constant 6 : index
    %c0_454 = arith.constant 0 : index
    %551 = vector.load %arg4[%c4_452, %c6_453, %c0_454] : memref<5x26x16xf32, #tpu.memory_space<vmem>>, vector<1x16x16xf32>
    %552 = vector.shape_cast %551 : vector<1x16x16xf32> to vector<16x16xf32>
    %cst_455 = arith.constant 0.213005543 : f32
    %553 = vector.broadcast %cst_455 : f32 to vector<16x16xf32>
    %554 = arith.mulf %553, %552 : vector<16x16xf32>
    %555 = arith.addf %550, %554 : vector<16x16xf32>
    %c4_456 = arith.constant 4 : index
    %c7_457 = arith.constant 7 : index
    %c0_458 = arith.constant 0 : index
    %556 = vector.load %arg4[%c4_456, %c7_457, %c0_458] : memref<5x26x16xf32, #tpu.memory_space<vmem>>, vector<1x16x16xf32>
    %557 = vector.shape_cast %556 : vector<1x16x16xf32> to vector<16x16xf32>
    %cst_459 = arith.constant 0.109360702 : f32
    %558 = vector.broadcast %cst_459 : f32 to vector<16x16xf32>
    %559 = arith.mulf %558, %557 : vector<16x16xf32>
    %560 = arith.addf %555, %559 : vector<16x16xf32>
    %c4_460 = arith.constant 4 : index
    %c8_461 = arith.constant 8 : index
    %c0_462 = arith.constant 0 : index
    %561 = vector.load %arg4[%c4_460, %c8_461, %c0_462] : memref<5x26x16xf32, #tpu.memory_space<vmem>>, vector<1x16x16xf32>
    %562 = vector.shape_cast %561 : vector<1x16x16xf32> to vector<16x16xf32>
    %cst_463 = arith.constant 0.0360007733 : f32
    %563 = vector.broadcast %cst_463 : f32 to vector<16x16xf32>
    %564 = arith.mulf %563, %562 : vector<16x16xf32>
    %565 = arith.addf %560, %564 : vector<16x16xf32>
    %c4_464 = arith.constant 4 : index
    %c9_465 = arith.constant 9 : index
    %c0_466 = arith.constant 0 : index
    %566 = vector.load %arg4[%c4_464, %c9_465, %c0_466] : memref<5x26x16xf32, #tpu.memory_space<vmem>>, vector<1x16x16xf32>
    %567 = vector.shape_cast %566 : vector<1x16x16xf32> to vector<16x16xf32>
    %cst_467 = arith.constant 0.00759875868 : f32
    %568 = vector.broadcast %cst_467 : f32 to vector<16x16xf32>
    %569 = arith.mulf %568, %567 : vector<16x16xf32>
    %570 = arith.addf %565, %569 : vector<16x16xf32>
    %c4_468 = arith.constant 4 : index
    %c10_469 = arith.constant 10 : index
    %c0_470 = arith.constant 0 : index
    %571 = vector.load %arg4[%c4_468, %c10_469, %c0_470] : memref<5x26x16xf32, #tpu.memory_space<vmem>>, vector<1x16x16xf32>
    %572 = vector.shape_cast %571 : vector<1x16x16xf32> to vector<16x16xf32>
    %cst_471 = arith.constant 0.00102838036 : f32
    %573 = vector.broadcast %cst_471 : f32 to vector<16x16xf32>
    %574 = arith.mulf %573, %572 : vector<16x16xf32>
    %575 = arith.addf %570, %574 : vector<16x16xf32>
    %c4_472 = arith.constant 4 : index
    %c0_473 = arith.constant 0 : index
    %c0_474 = arith.constant 0 : index
    %576 = vector.load %arg5[%c4_472, %c0_473, %c0_474] : memref<5x16x26xf32, #tpu.memory_space<vmem>>, vector<1x16x5xf32>
    %577 = vector.shape_cast %576 : vector<1x16x5xf32> to vector<16x5xf32>
    %578 = vector.shape_cast %8 : vector<16x5xf32> to vector<1x16x5xf32>
    tpu.vector_store %arg5[%c4_472, %c0_473, %c0_474], %578 {strides = array<i32>} : memref<5x16x26xf32, #tpu.memory_space<vmem>>, vector<1x16x5xf32>,
    %c4_475 = arith.constant 4 : index
    %c0_476 = arith.constant 0 : index
    %c21_477 = arith.constant 21 : index
    %579 = vector.load %arg5[%c4_475, %c0_476, %c21_477] : memref<5x16x26xf32, #tpu.memory_space<vmem>>, vector<1x16x5xf32>
    %580 = vector.shape_cast %579 : vector<1x16x5xf32> to vector<16x5xf32>
    %581 = vector.shape_cast %8 : vector<16x5xf32> to vector<1x16x5xf32>
    tpu.vector_store %arg5[%c4_475, %c0_476, %c21_477], %581 {strides = array<i32>} : memref<5x16x26xf32, #tpu.memory_space<vmem>>, vector<1x16x5xf32>,
    %c4_478 = arith.constant 4 : index
    %c0_479 = arith.constant 0 : index
    %c5_480 = arith.constant 5 : index
    %582 = vector.load %arg5[%c4_478, %c0_479, %c5_480] : memref<5x16x26xf32, #tpu.memory_space<vmem>>, vector<1x16x16xf32>
    %583 = vector.shape_cast %582 : vector<1x16x16xf32> to vector<16x16xf32>
    %584 = vector.shape_cast %575 : vector<16x16xf32> to vector<1x16x16xf32>
    tpu.vector_store %arg5[%c4_478, %c0_479, %c5_480], %584 {strides = array<i32>} : memref<5x16x26xf32, #tpu.memory_space<vmem>>, vector<1x16x16xf32>,
    %c4_481 = arith.constant 4 : index
    %c0_482 = arith.constant 0 : index
    %c0_483 = arith.constant 0 : index
    %585 = vector.load %arg5[%c4_481, %c0_482, %c0_483] : memref<5x16x26xf32, #tpu.memory_space<vmem>>, vector<1x16x16xf32>
    %586 = vector.shape_cast %585 : vector<1x16x16xf32> to vector<16x16xf32>
    %cst_484 = arith.constant 0.00102838036 : f32
    %587 = vector.broadcast %cst_484 : f32 to vector<16x16xf32>
    %588 = arith.mulf %587, %586 : vector<16x16xf32>
    %c4_485 = arith.constant 4 : index
    %c0_486 = arith.constant 0 : index
    %c1_487 = arith.constant 1 : index
    %589 = vector.load %arg5[%c4_485, %c0_486, %c1_487] : memref<5x16x26xf32, #tpu.memory_space<vmem>>, vector<1x16x16xf32>
    %590 = vector.shape_cast %589 : vector<1x16x16xf32> to vector<16x16xf32>
    %cst_488 = arith.constant 0.00759875868 : f32
    %591 = vector.broadcast %cst_488 : f32 to vector<16x16xf32>
    %592 = arith.mulf %591, %590 : vector<16x16xf32>
    %593 = arith.addf %588, %592 : vector<16x16xf32>
    %c4_489 = arith.constant 4 : index
    %c0_490 = arith.constant 0 : index
    %c2_491 = arith.constant 2 : index
    %594 = vector.load %arg5[%c4_489, %c0_490, %c2_491] : memref<5x16x26xf32, #tpu.memory_space<vmem>>, vector<1x16x16xf32>
    %595 = vector.shape_cast %594 : vector<1x16x16xf32> to vector<16x16xf32>
    %cst_492 = arith.constant 0.0360007733 : f32
    %596 = vector.broadcast %cst_492 : f32 to vector<16x16xf32>
    %597 = arith.mulf %596, %595 : vector<16x16xf32>
    %598 = arith.addf %593, %597 : vector<16x16xf32>
    %c4_493 = arith.constant 4 : index
    %c0_494 = arith.constant 0 : index
    %c3_495 = arith.constant 3 : index
    %599 = vector.load %arg5[%c4_493, %c0_494, %c3_495] : memref<5x16x26xf32, #tpu.memory_space<vmem>>, vector<1x16x16xf32>
    %600 = vector.shape_cast %599 : vector<1x16x16xf32> to vector<16x16xf32>
    %cst_496 = arith.constant 0.109360702 : f32
    %601 = vector.broadcast %cst_496 : f32 to vector<16x16xf32>
    %602 = arith.mulf %601, %600 : vector<16x16xf32>
    %603 = arith.addf %598, %602 : vector<16x16xf32>
    %c4_497 = arith.constant 4 : index
    %c0_498 = arith.constant 0 : index
    %c4_499 = arith.constant 4 : index
    %604 = vector.load %arg5[%c4_497, %c0_498, %c4_499] : memref<5x16x26xf32, #tpu.memory_space<vmem>>, vector<1x16x16xf32>
    %605 = vector.shape_cast %604 : vector<1x16x16xf32> to vector<16x16xf32>
    %cst_500 = arith.constant 0.213005543 : f32
    %606 = vector.broadcast %cst_500 : f32 to vector<16x16xf32>
    %607 = arith.mulf %606, %605 : vector<16x16xf32>
    %608 = arith.addf %603, %607 : vector<16x16xf32>
    %c4_501 = arith.constant 4 : index
    %c0_502 = arith.constant 0 : index
    %c5_503 = arith.constant 5 : index
    %609 = vector.load %arg5[%c4_501, %c0_502, %c5_503] : memref<5x16x26xf32, #tpu.memory_space<vmem>>, vector<1x16x16xf32>
    %610 = vector.shape_cast %609 : vector<1x16x16xf32> to vector<16x16xf32>
    %cst_504 = arith.constant 0.266011745 : f32
    %611 = vector.broadcast %cst_504 : f32 to vector<16x16xf32>
    %612 = arith.mulf %611, %610 : vector<16x16xf32>
    %613 = arith.addf %608, %612 : vector<16x16xf32>
    %c4_505 = arith.constant 4 : index
    %c0_506 = arith.constant 0 : index
    %c6_507 = arith.constant 6 : index
    %614 = vector.load %arg5[%c4_505, %c0_506, %c6_507] : memref<5x16x26xf32, #tpu.memory_space<vmem>>, vector<1x16x16xf32>
    %615 = vector.shape_cast %614 : vector<1x16x16xf32> to vector<16x16xf32>
    %cst_508 = arith.constant 0.213005543 : f32
    %616 = vector.broadcast %cst_508 : f32 to vector<16x16xf32>
    %617 = arith.mulf %616, %615 : vector<16x16xf32>
    %618 = arith.addf %613, %617 : vector<16x16xf32>
    %c4_509 = arith.constant 4 : index
    %c0_510 = arith.constant 0 : index
    %c7_511 = arith.constant 7 : index
    %619 = vector.load %arg5[%c4_509, %c0_510, %c7_511] : memref<5x16x26xf32, #tpu.memory_space<vmem>>, vector<1x16x16xf32>
    %620 = vector.shape_cast %619 : vector<1x16x16xf32> to vector<16x16xf32>
    %cst_512 = arith.constant 0.109360702 : f32
    %621 = vector.broadcast %cst_512 : f32 to vector<16x16xf32>
    %622 = arith.mulf %621, %620 : vector<16x16xf32>
    %623 = arith.addf %618, %622 : vector<16x16xf32>
    %c4_513 = arith.constant 4 : index
    %c0_514 = arith.constant 0 : index
    %c8_515 = arith.constant 8 : index
    %624 = vector.load %arg5[%c4_513, %c0_514, %c8_515] : memref<5x16x26xf32, #tpu.memory_space<vmem>>, vector<1x16x16xf32>
    %625 = vector.shape_cast %624 : vector<1x16x16xf32> to vector<16x16xf32>
    %cst_516 = arith.constant 0.0360007733 : f32
    %626 = vector.broadcast %cst_516 : f32 to vector<16x16xf32>
    %627 = arith.mulf %626, %625 : vector<16x16xf32>
    %628 = arith.addf %623, %627 : vector<16x16xf32>
    %c4_517 = arith.constant 4 : index
    %c0_518 = arith.constant 0 : index
    %c9_519 = arith.constant 9 : index
    %629 = vector.load %arg5[%c4_517, %c0_518, %c9_519] : memref<5x16x26xf32, #tpu.memory_space<vmem>>, vector<1x16x16xf32>
    %630 = vector.shape_cast %629 : vector<1x16x16xf32> to vector<16x16xf32>
    %cst_520 = arith.constant 0.00759875868 : f32
    %631 = vector.broadcast %cst_520 : f32 to vector<16x16xf32>
    %632 = arith.mulf %631, %630 : vector<16x16xf32>
    %633 = arith.addf %628, %632 : vector<16x16xf32>
    %c4_521 = arith.constant 4 : index
    %c0_522 = arith.constant 0 : index
    %c10_523 = arith.constant 10 : index
    %634 = vector.load %arg5[%c4_521, %c0_522, %c10_523] : memref<5x16x26xf32, #tpu.memory_space<vmem>>, vector<1x16x16xf32>
    %635 = vector.shape_cast %634 : vector<1x16x16xf32> to vector<16x16xf32>
    %cst_524 = arith.constant 0.00102838036 : f32
    %636 = vector.broadcast %cst_524 : f32 to vector<16x16xf32>
    %637 = arith.mulf %636, %635 : vector<16x16xf32>
    %638 = arith.addf %633, %637 : vector<16x16xf32>
    %639 = arith.mulf %134, %134 : vector<16x16xf32>
    %640 = arith.mulf %260, %260 : vector<16x16xf32>
    %641 = arith.mulf %134, %260 : vector<16x16xf32>
    %642 = arith.subf %386, %639 : vector<16x16xf32>
    %643 = arith.subf %512, %640 : vector<16x16xf32>
    %644 = arith.subf %638, %641 : vector<16x16xf32>
    %cst_525 = arith.constant 2.000000e+00 : f32
    %645 = vector.broadcast %cst_525 : f32 to vector<16x16xf32>
    %646 = arith.mulf %645, %641 : vector<16x16xf32>
    %cst_526 = arith.constant 9.99999974E-5 : f32
    %647 = vector.broadcast %cst_526 : f32 to vector<16x16xf32>
    %648 = arith.addf %646, %647 : vector<16x16xf32>
    %cst_527 = arith.constant 2.000000e+00 : f32
    %649 = vector.broadcast %cst_527 : f32 to vector<16x16xf32>
    %650 = arith.mulf %649, %644 : vector<16x16xf32>
    %cst_528 = arith.constant 8.99999984E-4 : f32
    %651 = vector.broadcast %cst_528 : f32 to vector<16x16xf32>
    %652 = arith.addf %650, %651 : vector<16x16xf32>
    %653 = arith.mulf %648, %652 : vector<16x16xf32>
    %654 = arith.addf %639, %640 : vector<16x16xf32>
    %cst_529 = arith.constant 9.99999974E-5 : f32
    %655 = vector.broadcast %cst_529 : f32 to vector<16x16xf32>
    %656 = arith.addf %654, %655 : vector<16x16xf32>
    %657 = arith.addf %642, %643 : vector<16x16xf32>
    %cst_530 = arith.constant 8.99999984E-4 : f32
    %658 = vector.broadcast %cst_530 : f32 to vector<16x16xf32>
    %659 = arith.addf %657, %658 : vector<16x16xf32>
    %660 = arith.mulf %656, %659 : vector<16x16xf32>
    %661 = arith.divf %653, %660 : vector<16x16xf32>
    %662 = vector.shape_cast %661 : vector<16x16xf32> to vector<1x16x16xf32>
    %cst_531 = arith.constant dense<0.000000e+00> : vector<1xf32>
    %663 = vector.multi_reduction <add>, %662, %cst_531 [1, 2] : vector<1x16x16xf32> to vector<1xf32>
    %664 = vector.shape_cast %663 : vector<1xf32> to vector<1x1x1xf32>
    %665 = vector.extract %664[0, 0, 0] : f32 from vector<1x1x1xf32>
    %666 = vector.broadcast %665 : f32 to vector<1x1xf32>
    %c0_532 = arith.constant 0 : index
    %c0_533 = arith.constant 0 : index
    %c0_534 = arith.constant 0 : index
    %667 = vector.load %arg3[%c0_532, %c0_533, %c0_534] : memref<1x1x1xf32, #tpu.memory_space<vmem>>, vector<1x1x1xf32>
    %668 = vector.shape_cast %667 : vector<1x1x1xf32> to vector<1x1xf32>
    %669 = vector.shape_cast %666 : vector<1x1xf32> to vector<1x1x1xf32>
    tpu.vector_store %arg3[%c0_532, %c0_533, %c0_534], %669 {strides = array<i32>} : memref<1x1x1xf32, #tpu.memory_space<vmem>>, vector<1x1x1xf32>,
    return
  }
  func.func @transform_0(%arg0: i32) -> (i32, i32, i32) {
    %c0_i32 = arith.constant 0 : i32
    %c0_i32_0 = arith.constant 0 : i32
    %c0_i32_1 = arith.constant 0 : i32
    return %arg0, %c0_i32, %c0_i32_0 : i32, i32, i32
  }
  func.func @transform_1(%arg0: i32) -> (i32, i32, i32) {
    %c0_i32 = arith.constant 0 : i32
    %c0_i32_0 = arith.constant 0 : i32
    %c0_i32_1 = arith.constant 0 : i32
    return %arg0, %c0_i32, %c0_i32_0 : i32, i32, i32
  }
  func.func @transform_2(%arg0: i32) -> (i32, i32, i32) {
    %c0_i32 = arith.constant 0 : i32
    %c0_i32_0 = arith.constant 0 : i32
    %c0_i32_1 = arith.constant 0 : i32
    return %arg0, %c0_i32, %c0_i32_0 : i32, i32, i32
  }
}

</mosaic_0001>

<llo_original>
// kernel: tpu_custom_call.1
$region0: #{tpu_custom_call.1}
  #allocation0 [shape = 'u32[]', space=smem, size = 0x4, offset = 0x4, fixed_abs, tag = 'smem constant byte address 0x4 - core index']
  #allocation1 [shape = 'u32[144,128]{1,0:T(1,128)}', space=vmem, size = 0x12000, scoped, tag = 'internal scratch']
  #allocation2 [shape = 'f32[5,26,16]{2,1,0:T(8,128)}', space=vmem, size = 0x14000, scoped, tag = 'scratch operand']
  #allocation3 [shape = 'f32[5,16,26]{2,1,0:T(8,128)}', space=vmem, size = 0xa000, scoped, tag = 'scratch operand']
  %s0 = inlined_call_operand.hbm [shape: f32[8,16,16], index: 0, kind: input, shape index: {}]
  %s1 = inlined_call_operand.hbm [shape: f32[8,16,16], index: 1, kind: input, shape index: {}]
  %s2 = inlined_call_operand.vmem [shape: f32[8,1,1], index: 2, kind: output, shape index: {}]
  %s3 = sld [smem:[#allocation0]]
  $region49: #{tpu_custom_call.1} parent=0
    _
  %s5 = ssub.s32 1, %s3
  %s6 = scalar_select 0, %s5, %s3
  $region1: #{tpu_custom_call.1} parent=0
    #allocation4 [shape = 'u8[16384]{0}', space=vmem, size = 0x4000, scoped, tag = 'input window, operand 0']
    #allocation5 [shape = 's32[2]{0}', space=sflag, size = 0x8, scoped, tag = 'scoped memory for tpu_custom_call.1']
    #allocation6 [shape = 'u8[16384]{0}', space=vmem, size = 0x4000, scoped, tag = 'input window, operand 1']
    #allocation7 [shape = 's32[2]{0}', space=sflag, size = 0x8, scoped, tag = 'scoped memory for tpu_custom_call.1']
    %7 = vsyncpa [#allocation5], 0
    %s8 = scalar_lea.sflag [#allocation5], 1
    %9 = vsyncpa %s8, 0
    %10 = vsyncpa [#allocation7], 0
    %s11 = scalar_lea.sflag [#allocation7], 1
    %12 = vsyncpa %s11, 0
    loop: start=0, step=1, limit=10
    $region2: #{tpu_custom_call.1} parent=1 // loop_pre_header
      _
    $region3: #{tpu_custom_call.1} parent=1 // loop_header
      %s14 = sphi 0, %s18
      %p15 = scmp.ge.s32.totalorder %s14, 10
      %s24 = sphi 0, %s26
      %s27 = sphi 0, %s24
      %s28 = sphi 0, %s27
      %s44 = sphi 0, %s28
      %s50 = sphi 0, %s52
      %s53 = sphi 0, %s50
      %s54 = sphi 0, %s53
      %s70 = sphi 0, %s54
      %s76 = sphi 0, %s78
      %s79 = sphi 0, %s76
      %s80 = sphi 0, %s79
      %s96 = sphi 0, %s80
    $region4: #{tpu_custom_call.1} parent=1 // loop_header_branch
      %17 = sbr.rel (%p15) target = $region8
    $region5: #{tpu_custom_call.1} parent=1 // loop_body
      %s19 = ssub.s32 %s14, 1
      %s20 = ssub.s32 %s14, 2
      %s21 = sadd.s32 %s14, 1
      %s22 = ssub.s32 %s14, %s21
      %p23 = scmp.eq.s32.totalorder %s22, 0
      %s25 = sadd.s32 %s24, 1
      %s26 = scalar_select %p23, %s24, %s25
      %p29 = pneg %p23
      %p30 = scmp.eq.s32.totalorder %s14, 7
      %p31 = por %p29, %p30
      %p32 = scmp.ne.s32.totalorder %s24, %s27
      %p33 = scmp.eq.s32.totalorder %s14, 0
      %p34 = por %p32, %p33
      %p35 = scmp.ne.s32.totalorder %s24, %s27
      %p36 = scmp.eq.s32.totalorder %s19, 7
      %p37 = por %p35, %p36
      %p38 = scmp.ne.s32.totalorder %s27, %s28
      %p39 = scmp.eq.s32.totalorder %s19, 0
      %p40 = por %p38, %p39
      %p41 = scmp.ne.s32.totalorder %s27, %s28
      %p42 = scmp.eq.s32.totalorder %s20, 7
      %p43 = por %p41, %p42
      %p45 = scmp.ne.s32.totalorder %s28, %s44
      %p46 = scmp.eq.s32.totalorder %s20, 0
      %p47 = por %p45, %p46
      %s48 = ssub.s32 %s14, %s21
      %p49 = scmp.eq.s32.totalorder %s48, 0
      %s51 = sadd.s32 %s50, 1
      %s52 = scalar_select %p49, %s50, %s51
      %p55 = pneg %p49
      %p56 = scmp.eq.s32.totalorder %s14, 7
      %p57 = por %p55, %p56
      %p58 = scmp.ne.s32.totalorder %s50, %s53
      %p59 = scmp.eq.s32.totalorder %s14, 0
      %p60 = por %p58, %p59
      %p61 = scmp.ne.s32.totalorder %s50, %s53
      %p62 = scmp.eq.s32.totalorder %s19, 7
      %p63 = por %p61, %p62
      %p64 = scmp.ne.s32.totalorder %s53, %s54
      %p65 = scmp.eq.s32.totalorder %s19, 0
      %p66 = por %p64, %p65
      %p67 = scmp.ne.s32.totalorder %s53, %s54
      %p68 = scmp.eq.s32.totalorder %s20, 7
      %p69 = por %p67, %p68
      %p71 = scmp.ne.s32.totalorder %s54, %s70
      %p72 = scmp.eq.s32.totalorder %s20, 0
      %p73 = por %p71, %p72
      %s74 = ssub.s32 %s14, %s21
      %p75 = scmp.eq.s32.totalorder %s74, 0
      %s77 = sadd.s32 %s76, 1
      %s78 = scalar_select %p75, %s76, %s77
      %p81 = pneg %p75
      %p82 = scmp.eq.s32.totalorder %s14, 7
      %p83 = por %p81, %p82
      %p84 = scmp.ne.s32.totalorder %s76, %s79
      %p85 = scmp.eq.s32.totalorder %s14, 0
      %p86 = por %p84, %p85
      %p87 = scmp.ne.s32.totalorder %s76, %s79
      %p88 = scmp.eq.s32.totalorder %s19, 7
      %p89 = por %p87, %p88
      %p90 = scmp.ne.s32.totalorder %s79, %s80
      %p91 = scmp.eq.s32.totalorder %s19, 0
      %p92 = por %p90, %p91
      %p93 = scmp.ne.s32.totalorder %s79, %s80
      %p94 = scmp.eq.s32.totalorder %s20, 7
      %p95 = por %p93, %p94
      %p97 = scmp.ne.s32.totalorder %s80, %s96
      %p98 = scmp.eq.s32.totalorder %s20, 0
      %p99 = por %p97, %p98
      %p100 = scmp.le.s32.totalorder 1, %s14
      %p101 = scmp.lt.s32.totalorder %s14, 9
      %p102 = pnand %p100, %p101
      %p103 = pneg %p102
      // Predicated region
      $region9: #{tpu_custom_call.1} parent=5 // pred_check
        _
      $region10: #{tpu_custom_call.1} parent=5 // pred_check_branch
        %105 = sbr.rel (%p102) target = $region12
      $region11: #{tpu_custom_call.1} parent=5 // pred_region
        %s106 = ssub.s32 %s14, 1
      $region12: #{tpu_custom_call.1} parent=5 // pred_fallthru
        _
      %p107 = scmp.lt.s32.totalorder %s14, 8
      // Predicated region
      $region13: #{tpu_custom_call.1} parent=5 // pred_check
        %p108 = pneg %p107
      $region14: #{tpu_custom_call.1} parent=5 // pred_check_branch
        %110 = sbr.rel (%p108) target = $region16
      $region15: #{tpu_custom_call.1} parent=5 // pred_region
        // Predicated region
        $region17: #{tpu_custom_call.1} parent=15 // pred_check
          %p111 = pneg %p34
        $region18: #{tpu_custom_call.1} parent=15 // pred_check_branch
          %113 = sbr.rel (%p111) target = $region20
        $region19: #{tpu_custom_call.1} parent=15 // pred_region
          %s114 = sand.u32 %s24, 1
          %s115 = scalar_lea.sflag [#allocation5], %s114
          %s116 = sand.u32 %s24, 1
          %s117 = smul.addr %s116, 16
          %s118 = scalar_lea.vmem [#allocation4], %s117
          %s120 = ssub.s32 256, 256
          %121 = vsyncadd %s115, %s120
          %s122 = smul.addr %s14, 2
          %s123 = smul.addr %s122, 128
          %s124 = scalar_lea.hbm %s0, %s123
          %s125 = sshll.u32 %s118, 4
          %s126 = int_to_ptr.vmem [resolvable:$true] %s125
          %131 = dma.hbm_to_vmem [thread:$0]  %s124, 256, %s126, %s115, 128, 128, 8
        $region20: #{tpu_custom_call.1} parent=15 // pred_fallthru
          _
        // Predicated region
        $region21: #{tpu_custom_call.1} parent=15 // pred_check
          %p132 = pneg %p60
        $region22: #{tpu_custom_call.1} parent=15 // pred_check_branch
          %134 = sbr.rel (%p132) target = $region24
        $region23: #{tpu_custom_call.1} parent=15 // pred_region
          %s135 = sand.u32 %s50, 1
          %s136 = scalar_lea.sflag [#allocation7], %s135
          %s137 = sand.u32 %s50, 1
          %s138 = smul.addr %s137, 16
          %s139 = scalar_lea.vmem [#allocation6], %s138
          %s141 = ssub.s32 256, 256
          %142 = vsyncadd %s136, %s141
          %s143 = smul.addr %s14, 2
          %s144 = smul.addr %s143, 128
          %s145 = scalar_lea.hbm %s1, %s144
          %s146 = sshll.u32 %s139, 4
          %s147 = int_to_ptr.vmem [resolvable:$true] %s146
          %152 = dma.hbm_to_vmem [thread:$0]  %s145, 256, %s147, %s136, 128, 128, 8
        $region24: #{tpu_custom_call.1} parent=15 // pred_fallthru
          _
      $region16: #{tpu_custom_call.1} parent=5 // pred_fallthru
        _
      %p153 = scmp.le.s32.totalorder 1, %s14
      %p154 = scmp.lt.s32.totalorder %s14, 9
      %p155 = pnand %p153, %p154
      %p156 = pneg %p155
      // Predicated region
      $region25: #{tpu_custom_call.1} parent=5 // pred_check
        _
      $region26: #{tpu_custom_call.1} parent=5 // pred_check_branch
        %158 = sbr.rel (%p155) target = $region28
      $region27: #{tpu_custom_call.1} parent=5 // pred_region
        %s159 = ssub.s32 %s14, 1
        %s160 = sand.u32 %s27, 1
        %s161 = scalar_lea.sflag [#allocation5], %s160
        %s162 = sand.u32 %s27, 1
        %s163 = smul.addr %s162, 16
        %s164 = scalar_lea.vmem [#allocation4], %s163
        // Predicated region
        $region29: #{tpu_custom_call.1} parent=27 // pred_check
          %p165 = pneg %p40
        $region30: #{tpu_custom_call.1} parent=27 // pred_check_branch
          %167 = sbr.rel (%p165) target = $region32
        $region31: #{tpu_custom_call.1} parent=27 // pred_region
          %168 = dma.done %s161, 256
        $region32: #{tpu_custom_call.1} parent=27 // pred_fallthru
          _
        %s169 = sand.u32 %s53, 1
        %s170 = scalar_lea.sflag [#allocation7], %s169
        %s171 = sand.u32 %s53, 1
        %s172 = smul.addr %s171, 16
        %s173 = scalar_lea.vmem [#allocation6], %s172
        // Predicated region
        $region33: #{tpu_custom_call.1} parent=27 // pred_check
          %p174 = pneg %p66
        $region34: #{tpu_custom_call.1} parent=27 // pred_check_branch
          %176 = sbr.rel (%p174) target = $region36
        $region35: #{tpu_custom_call.1} parent=27 // pred_region
          %177 = dma.done %s170, 256
        $region36: #{tpu_custom_call.1} parent=27 // pred_fallthru
          _
        %s178 = sand.u32 %s27, 1
        %s179 = scalar_lea.sflag [#allocation5], %s178
        %s180 = sand.u32 %s27, 1
        %s181 = smul.addr %s180, 16
        %s182 = scalar_lea.vmem [#allocation4], %s181
        %p183 = pneg %p40
        %p184 = pneg %p37
        %s185 = sand.u32 %s53, 1
        %s186 = scalar_lea.sflag [#allocation7], %s185
        %s187 = sand.u32 %s53, 1
        %s188 = smul.addr %s187, 16
        %s189 = scalar_lea.vmem [#allocation6], %s188
        %p190 = pneg %p66
        %p191 = pneg %p63
        %p192 = pneg %p92
        %p193 = pneg %p89
        %p194 = scmp.lt.s32.totalorder %s19, 7
        %s195 = scalar_select %p194, %s19, 7
        %s196 = scalar_lea.vmem %s2, %s195
        %p197 = scmp.lt.s32.totalorder %s19, 7
        %s198 = scalar_select %p197, %s19, 7
        %s199 = scalar_lea.vmem %s2, %s198
        %v200 = vld [vmem:[%s164] sm:$0xff]
        %v201 = vld [vmem:[%s164 + $0x8] sm:$0xff]
        %v202 = vld [vmem:[%s173] sm:$0xff]
        %v203 = vld [vmem:[%s173 + $0x8] sm:$0xff]
        %v204 = vmul.f32 %v200, %v200
        %v205 = vmul.f32 %v201, %v201
        %v206 = vmul.f32 %v202, %v202
        %v207 = vmul.f32 %v203, %v203
        %v208 = vmul.f32 %v200, %v202
        %v209 = vmul.f32 %v201, %v203
        %vm210 = vcmask 126976
        %211 = vst.msk [vmem:[#allocation2] sm:$0x1f] %vm210, 0.0
        %212 = vst.msk [vmem:[#allocation2 + $0x15] sm:$0x1f] %vm210, 0.0
        %vm213 = vcmask 130048
        %214 = vst.msk [vmem:[#allocation2 + $0x5] sm:$0xff] %vm213, %v200
        %215 = vst.msk [vmem:[#allocation2 + $0xd] sm:$0xff] %vm213, %v201
        %v216 = vld [vmem:[#allocation2] sm:$0xff]
        %v217 = vld [vmem:[#allocation2 + $0x8] sm:$0xff]
        %v218 = vmul.f32 %v216, 0.0010283804
        %v219 = vmul.f32 %v217, 0.0010283804
        %v220 = vld [vmem:[#allocation2 + $0x1] sm:$0xff]
        %v221 = vld [vmem:[#allocation2 + $0x9] sm:$0xff]
        %v222 = vmul.f32 %v220, 0.0075987587
        %v223 = vmul.f32 %v221, 0.0075987587
        %v224 = vadd.f32 %v218, %v222
        %v225 = vadd.f32 %v219, %v223
        %v226 = vld [vmem:[#allocation2 + $0x2] sm:$0xff]
        %v227 = vld [vmem:[#allocation2 + $0xa] sm:$0xff]
        %v228 = vmul.f32 %v226, 0.036000773
        %v229 = vmul.f32 %v227, 0.036000773
        %v230 = vadd.f32 %v224, %v228
        %v231 = vadd.f32 %v225, %v229
        %v232 = vld [vmem:[#allocation2 + $0x3] sm:$0xff]
        %v233 = vld [vmem:[#allocation2 + $0xb] sm:$0xff]
        %v234 = vmul.f32 %v232, 0.1093607
        %v235 = vmul.f32 %v233, 0.1093607
        %v236 = vadd.f32 %v230, %v234
        %v237 = vadd.f32 %v231, %v235
        %v238 = vld [vmem:[#allocation2 + $0x4] sm:$0xff]
        %v239 = vld [vmem:[#allocation2 + $0xc] sm:$0xff]
        %v240 = vmul.f32 %v238, 0.21300554
        %v241 = vmul.f32 %v239, 0.21300554
        %v242 = vadd.f32 %v236, %v240
        %v243 = vadd.f32 %v237, %v241
        %v244 = vld [vmem:[#allocation2 + $0x5] sm:$0xff]
        %v245 = vld [vmem:[#allocation2 + $0xd] sm:$0xff]
        %v246 = vmul.f32 %v244, 0.26601174
        %v247 = vmul.f32 %v245, 0.26601174
        %v248 = vadd.f32 %v242, %v246
        %v249 = vadd.f32 %v243, %v247
        %v250 = vld [vmem:[#allocation2 + $0x6] sm:$0xff]
        %v251 = vld [vmem:[#allocation2 + $0xe] sm:$0xff]
        %v252 = vmul.f32 %v250, 0.21300554
        %v253 = vmul.f32 %v251, 0.21300554
        %v254 = vadd.f32 %v248, %v252
        %v255 = vadd.f32 %v249, %v253
        %v256 = vld [vmem:[#allocation2 + $0x7] sm:$0xff]
        %v257 = vld [vmem:[#allocation2 + $0xf] sm:$0xff]
        %v258 = vmul.f32 %v256, 0.1093607
        %v259 = vmul.f32 %v257, 0.1093607
        %v260 = vadd.f32 %v254, %v258
        %v261 = vadd.f32 %v255, %v259
        %v262 = vld [vmem:[#allocation2 + $0x10] sm:$0xff]
        %v263 = vmul.f32 %v217, 0.036000773
        %v264 = vmul.f32 %v262, 0.036000773
        %v265 = vadd.f32 %v260, %v263
        %v266 = vadd.f32 %v261, %v264
        %v267 = vld [vmem:[#allocation2 + $0x11] sm:$0xff]
        %v268 = vmul.f32 %v267, 0.0075987587
        %v269 = vadd.f32 %v265, %v223
        %v270 = vadd.f32 %v266, %v268
        %v271 = vld [vmem:[#allocation2 + $0x12] sm:$0xff]
        %v272 = vmul.f32 %v227, 0.0010283804
        %v273 = vmul.f32 %v271, 0.0010283804
        %v274 = vadd.f32 %v269, %v272
        %v275 = vadd.f32 %v270, %v273
        %vm276 = vcmask 39936
        %277 = vst.msk [vmem:[#allocation3] sm:$0xff] %vm276, 0.0
        %278 = vst.msk [vmem:[#allocation3 + $0x8] sm:$0xff] %vm276, 0.0
        %vm279 = vcmask 212136
        %280 = vst.msk [vmem:[#allocation3] sm:$0xff] %vm279, 0.0
        %281 = vst.msk [vmem:[#allocation3 + $0x8] sm:$0xff] %vm279, 0.0
        %284 = vrot.lane.b32.xlu0 %v274, 5
        %v285 = vpop.permute.xlu0 %284
        %286 = vrot.lane.b32.xlu0 %v275, 5
        %v287 = vpop.permute.xlu0 %286
        %vm290 = vcmask 171048
        %291 = vst.msk [vmem:[#allocation3] sm:$0xff] %vm290, %v285
        %292 = vst.msk [vmem:[#allocation3 + $0x8] sm:$0xff] %vm290, %v287
        %v293 = vld [vmem:[#allocation3] sm:$0xff]
        %v294 = vld [vmem:[#allocation3 + $0x8] sm:$0xff]
        %v295 = vmul.f32 %v293, 0.0010283804
        %v296 = vmul.f32 %v294, 0.0010283804
        %v297 = vmul.f32 %v293, 0.0075987587
        %v298 = vmul.f32 %v294, 0.0075987587
        %301 = vrot.lane.b32.xlu0 %v297, 127
        %v302 = vpop.permute.xlu0 %301
        %303 = vrot.lane.b32.xlu0 %v298, 127
        %v304 = vpop.permute.xlu0 %303
        %v307 = vadd.f32 %v295, %v302
        %v308 = vadd.f32 %v296, %v304
        %v309 = vmul.f32 %v293, 0.036000773
        %v310 = vmul.f32 %v294, 0.036000773
        %313 = vrot.lane.b32.xlu0 %v309, 126
        %v314 = vpop.permute.xlu0 %313
        %315 = vrot.lane.b32.xlu0 %v310, 126
        %v316 = vpop.permute.xlu0 %315
        %v319 = vadd.f32 %v307, %v314
        %v320 = vadd.f32 %v308, %v316
        %v321 = vmul.f32 %v293, 0.1093607
        %v322 = vmul.f32 %v294, 0.1093607
        %325 = vrot.lane.b32.xlu0 %v321, 125
        %v326 = vpop.permute.xlu0 %325
        %327 = vrot.lane.b32.xlu0 %v322, 125
        %v328 = vpop.permute.xlu0 %327
        %v331 = vadd.f32 %v319, %v326
        %v332 = vadd.f32 %v320, %v328
        %v333 = vmul.f32 %v293, 0.21300554
        %v334 = vmul.f32 %v294, 0.21300554
        %337 = vrot.lane.b32.xlu0 %v333, 124
        %v338 = vpop.permute.xlu0 %337
        %339 = vrot.lane.b32.xlu0 %v334, 124
        %v340 = vpop.permute.xlu0 %339
        %v343 = vadd.f32 %v331, %v338
        %v344 = vadd.f32 %v332, %v340
        %v345 = vmul.f32 %v293, 0.26601174
        %v346 = vmul.f32 %v294, 0.26601174
        %349 = vrot.lane.b32.xlu0 %v345, 123
        %v350 = vpop.permute.xlu0 %349
        %351 = vrot.lane.b32.xlu0 %v346, 123
        %v352 = vpop.permute.xlu0 %351
        %v355 = vadd.f32 %v343, %v350
        %v356 = vadd.f32 %v344, %v352
        %357 = vrot.lane.b32.xlu0 %v333, 122
        %v358 = vpop.permute.xlu0 %357
        %359 = vrot.lane.b32.xlu0 %v334, 122
        %v360 = vpop.permute.xlu0 %359
        %v363 = vadd.f32 %v355, %v358
        %v364 = vadd.f32 %v356, %v360
        %365 = vrot.lane.b32.xlu0 %v321, 121
        %v366 = vpop.permute.xlu0 %365
        %367 = vrot.lane.b32.xlu0 %v322, 121
        %v368 = vpop.permute.xlu0 %367
        %v371 = vadd.f32 %v363, %v366
        %v372 = vadd.f32 %v364, %v368
        %373 = vrot.lane.b32.xlu0 %v309, 120
        %v374 = vpop.permute.xlu0 %373
        %375 = vrot.lane.b32.xlu0 %v310, 120
        %v376 = vpop.permute.xlu0 %375
        %v379 = vadd.f32 %v371, %v374
        %v380 = vadd.f32 %v372, %v376
        %381 = vrot.lane.b32.xlu0 %v297, 119
        %v382 = vpop.permute.xlu0 %381
        %383 = vrot.lane.b32.xlu0 %v298, 119
        %v384 = vpop.permute.xlu0 %383
        %v387 = vadd.f32 %v379, %v382
        %v388 = vadd.f32 %v380, %v384
        %391 = vrot.lane.b32.xlu0 %v295, 118
        %v392 = vpop.permute.xlu0 %391
        %393 = vrot.lane.b32.xlu0 %v296, 118
        %v394 = vpop.permute.xlu0 %393
        %v397 = vadd.f32 %v387, %v392
        %v398 = vadd.f32 %v388, %v394
        %s399 = scalar_lea.vmem [#allocation2], 32
        %400 = vst.msk [vmem:[%s399] sm:$0x1f] %vm210, 0.0
        %401 = vst.msk [vmem:[%s399 + $0x15] sm:$0x1f] %vm210, 0.0
        %402 = vst.msk [vmem:[%s399 + $0x5] sm:$0xff] %vm213, %v202
        %403 = vst.msk [vmem:[%s399 + $0xd] sm:$0xff] %vm213, %v203
        %v404 = vld [vmem:[%s399] sm:$0xff]
        %v405 = vld [vmem:[%s399 + $0x8] sm:$0xff]
        %v406 = vmul.f32 %v404, 0.0010283804
        %v407 = vmul.f32 %v405, 0.0010283804
        %v408 = vld [vmem:[%s399 + $0x1] sm:$0xff]
        %v409 = vld [vmem:[%s399 + $0x9] sm:$0xff]
        %v410 = vmul.f32 %v408, 0.0075987587
        %v411 = vmul.f32 %v409, 0.0075987587
        %v412 = vadd.f32 %v406, %v410
        %v413 = vadd.f32 %v407, %v411
        %v414 = vld [vmem:[%s399 + $0x2] sm:$0xff]
        %v415 = vld [vmem:[%s399 + $0xa] sm:$0xff]
        %v416 = vmul.f32 %v414, 0.036000773
        %v417 = vmul.f32 %v415, 0.036000773
        %v418 = vadd.f32 %v412, %v416
        %v419 = vadd.f32 %v413, %v417
        %v420 = vld [vmem:[%s399 + $0x3] sm:$0xff]
        %v421 = vld [vmem:[%s399 + $0xb] sm:$0xff]
        %v422 = vmul.f32 %v420, 0.1093607
        %v423 = vmul.f32 %v421, 0.1093607
        %v424 = vadd.f32 %v418, %v422
        %v425 = vadd.f32 %v419, %v423
        %v426 = vld [vmem:[%s399 + $0x4] sm:$0xff]
        %v427 = vld [vmem:[%s399 + $0xc] sm:$0xff]
        %v428 = vmul.f32 %v426, 0.21300554
        %v429 = vmul.f32 %v427, 0.21300554
        %v430 = vadd.f32 %v424, %v428
        %v431 = vadd.f32 %v425, %v429
        %v432 = vld [vmem:[%s399 + $0x5] sm:$0xff]
        %v433 = vld [vmem:[%s399 + $0xd] sm:$0xff]
        %v434 = vmul.f32 %v432, 0.26601174
        %v435 = vmul.f32 %v433, 0.26601174
        %v436 = vadd.f32 %v430, %v434
        %v437 = vadd.f32 %v431, %v435
        %v438 = vld [vmem:[%s399 + $0x6] sm:$0xff]
        %v439 = vld [vmem:[%s399 + $0xe] sm:$0xff]
        %v440 = vmul.f32 %v438, 0.21300554
        %v441 = vmul.f32 %v439, 0.21300554
        %v442 = vadd.f32 %v436, %v440
        %v443 = vadd.f32 %v437, %v441
        %v444 = vld [vmem:[%s399 + $0x7] sm:$0xff]
        %v445 = vld [vmem:[%s399 + $0xf] sm:$0xff]
        %v446 = vmul.f32 %v444, 0.1093607
        %v447 = vmul.f32 %v445, 0.1093607
        %v448 = vadd.f32 %v442, %v446
        %v449 = vadd.f32 %v443, %v447
        %v450 = vld [vmem:[%s399 + $0x10] sm:$0xff]
        %v451 = vmul.f32 %v405, 0.036000773
        %v452 = vmul.f32 %v450, 0.036000773
        %v453 = vadd.f32 %v448, %v451
        %v454 = vadd.f32 %v449, %v452
        %v455 = vld [vmem:[%s399 + $0x11] sm:$0xff]
        %v456 = vmul.f32 %v455, 0.0075987587
        %v457 = vadd.f32 %v453, %v411
        %v458 = vadd.f32 %v454, %v456
        %v459 = vld [vmem:[%s399 + $0x12] sm:$0xff]
        %v460 = vmul.f32 %v415, 0.0010283804
        %v461 = vmul.f32 %v459, 0.0010283804
        %v462 = vadd.f32 %v457, %v460
        %v463 = vadd.f32 %v458, %v461
        %s464 = scalar_lea.vmem [#allocation3], 16
        %465 = vst.msk [vmem:[%s464] sm:$0xff] %vm276, 0.0
        %466 = vst.msk [vmem:[%s464 + $0x8] sm:$0xff] %vm276, 0.0
        %467 = vst.msk [vmem:[%s464] sm:$0xff] %vm279, 0.0
        %468 = vst.msk [vmem:[%s464 + $0x8] sm:$0xff] %vm279, 0.0
        %471 = vrot.lane.b32.xlu0 %v462, 5
        %v472 = vpop.permute.xlu0 %471
        %473 = vrot.lane.b32.xlu0 %v463, 5
        %v474 = vpop.permute.xlu0 %473
        %477 = vst.msk [vmem:[%s464] sm:$0xff] %vm290, %v472
        %478 = vst.msk [vmem:[%s464 + $0x8] sm:$0xff] %vm290, %v474
        %v479 = vld [vmem:[%s464] sm:$0xff]
        %v480 = vld [vmem:[%s464 + $0x8] sm:$0xff]
        %v481 = vmul.f32 %v479, 0.0010283804
        %v482 = vmul.f32 %v480, 0.0010283804
        %v483 = vmul.f32 %v479, 0.0075987587
        %v484 = vmul.f32 %v480, 0.0075987587
        %487 = vrot.lane.b32.xlu0 %v483, 127
        %v488 = vpop.permute.xlu0 %487
        %489 = vrot.lane.b32.xlu0 %v484, 127
        %v490 = vpop.permute.xlu0 %489
        %v493 = vadd.f32 %v481, %v488
        %v494 = vadd.f32 %v482, %v490
        %v495 = vmul.f32 %v479, 0.036000773
        %v496 = vmul.f32 %v480, 0.036000773
        %499 = vrot.lane.b32.xlu0 %v495, 126
        %v500 = vpop.permute.xlu0 %499
        %501 = vrot.lane.b32.xlu0 %v496, 126
        %v502 = vpop.permute.xlu0 %501
        %v505 = vadd.f32 %v493, %v500
        %v506 = vadd.f32 %v494, %v502
        %v507 = vmul.f32 %v479, 0.1093607
        %v508 = vmul.f32 %v480, 0.1093607
        %511 = vrot.lane.b32.xlu0 %v507, 125
        %v512 = vpop.permute.xlu0 %511
        %513 = vrot.lane.b32.xlu0 %v508, 125
        %v514 = vpop.permute.xlu0 %513
        %v517 = vadd.f32 %v505, %v512
        %v518 = vadd.f32 %v506, %v514
        %v519 = vmul.f32 %v479, 0.21300554
        %v520 = vmul.f32 %v480, 0.21300554
        %523 = vrot.lane.b32.xlu0 %v519, 124
        %v524 = vpop.permute.xlu0 %523
        %525 = vrot.lane.b32.xlu0 %v520, 124
        %v526 = vpop.permute.xlu0 %525
        %v529 = vadd.f32 %v517, %v524
        %v530 = vadd.f32 %v518, %v526
        %v531 = vmul.f32 %v479, 0.26601174
        %v532 = vmul.f32 %v480, 0.26601174
        %535 = vrot.lane.b32.xlu0 %v531, 123
        %v536 = vpop.permute.xlu0 %535
        %537 = vrot.lane.b32.xlu0 %v532, 123
        %v538 = vpop.permute.xlu0 %537
        %v541 = vadd.f32 %v529, %v536
        %v542 = vadd.f32 %v530, %v538
        %543 = vrot.lane.b32.xlu0 %v519, 122
        %v544 = vpop.permute.xlu0 %543
        %545 = vrot.lane.b32.xlu0 %v520, 122
        %v546 = vpop.permute.xlu0 %545
        %v549 = vadd.f32 %v541, %v544
        %v550 = vadd.f32 %v542, %v546
        %551 = vrot.lane.b32.xlu0 %v507, 121
        %v552 = vpop.permute.xlu0 %551
        %553 = vrot.lane.b32.xlu0 %v508, 121
        %v554 = vpop.permute.xlu0 %553
        %v557 = vadd.f32 %v549, %v552
        %v558 = vadd.f32 %v550, %v554
        %559 = vrot.lane.b32.xlu0 %v495, 120
        %v560 = vpop.permute.xlu0 %559
        %561 = vrot.lane.b32.xlu0 %v496, 120
        %v562 = vpop.permute.xlu0 %561
        %v565 = vadd.f32 %v557, %v560
        %v566 = vadd.f32 %v558, %v562
        %567 = vrot.lane.b32.xlu0 %v483, 119
        %v568 = vpop.permute.xlu0 %567
        %569 = vrot.lane.b32.xlu0 %v484, 119
        %v570 = vpop.permute.xlu0 %569
        %v573 = vadd.f32 %v565, %v568
        %v574 = vadd.f32 %v566, %v570
        %577 = vrot.lane.b32.xlu0 %v481, 118
        %v578 = vpop.permute.xlu0 %577
        %579 = vrot.lane.b32.xlu0 %v482, 118
        %v580 = vpop.permute.xlu0 %579
        %v583 = vadd.f32 %v573, %v578
        %v584 = vadd.f32 %v574, %v580
        %s585 = scalar_lea.vmem [#allocation2], 64
        %586 = vst.msk [vmem:[%s585] sm:$0x1f] %vm210, 0.0
        %587 = vst.msk [vmem:[%s585 + $0x15] sm:$0x1f] %vm210, 0.0
        %588 = vst.msk [vmem:[%s585 + $0x5] sm:$0xff] %vm213, %v204
        %589 = vst.msk [vmem:[%s585 + $0xd] sm:$0xff] %vm213, %v205
        %v590 = vld [vmem:[%s585] sm:$0xff]
        %v591 = vld [vmem:[%s585 + $0x8] sm:$0xff]
        %v592 = vmul.f32 %v590, 0.0010283804
        %v593 = vmul.f32 %v591, 0.0010283804
        %v594 = vld [vmem:[%s585 + $0x1] sm:$0xff]
        %v595 = vld [vmem:[%s585 + $0x9] sm:$0xff]
        %v596 = vmul.f32 %v594, 0.0075987587
        %v597 = vmul.f32 %v595, 0.0075987587
        %v598 = vadd.f32 %v592, %v596
        %v599 = vadd.f32 %v593, %v597
        %v600 = vld [vmem:[%s585 + $0x2] sm:$0xff]
        %v601 = vld [vmem:[%s585 + $0xa] sm:$0xff]
        %v602 = vmul.f32 %v600, 0.036000773
        %v603 = vmul.f32 %v601, 0.036000773
        %v604 = vadd.f32 %v598, %v602
        %v605 = vadd.f32 %v599, %v603
        %v606 = vld [vmem:[%s585 + $0x3] sm:$0xff]
        %v607 = vld [vmem:[%s585 + $0xb] sm:$0xff]
        %v608 = vmul.f32 %v606, 0.1093607
        %v609 = vmul.f32 %v607, 0.1093607
        %v610 = vadd.f32 %v604, %v608
        %v611 = vadd.f32 %v605, %v609
        %v612 = vld [vmem:[%s585 + $0x4] sm:$0xff]
        %v613 = vld [vmem:[%s585 + $0xc] sm:$0xff]
        %v614 = vmul.f32 %v612, 0.21300554
        %v615 = vmul.f32 %v613, 0.21300554
        %v616 = vadd.f32 %v610, %v614
        %v617 = vadd.f32 %v611, %v615
        %v618 = vld [vmem:[%s585 + $0x5] sm:$0xff]
        %v619 = vld [vmem:[%s585 + $0xd] sm:$0xff]
        %v620 = vmul.f32 %v618, 0.26601174
        %v621 = vmul.f32 %v619, 0.26601174
        %v622 = vadd.f32 %v616, %v620
        %v623 = vadd.f32 %v617, %v621
        %v624 = vld [vmem:[%s585 + $0x6] sm:$0xff]
        %v625 = vld [vmem:[%s585 + $0xe] sm:$0xff]
        %v626 = vmul.f32 %v624, 0.21300554
        %v627 = vmul.f32 %v625, 0.21300554
        %v628 = vadd.f32 %v622, %v626
        %v629 = vadd.f32 %v623, %v627
        %v630 = vld [vmem:[%s585 + $0x7] sm:$0xff]
        %v631 = vld [vmem:[%s585 + $0xf] sm:$0xff]
        %v632 = vmul.f32 %v630, 0.1093607
        %v633 = vmul.f32 %v631, 0.1093607
        %v634 = vadd.f32 %v628, %v632
        %v635 = vadd.f32 %v629, %v633
        %v636 = vld [vmem:[%s585 + $0x10] sm:$0xff]
        %v637 = vmul.f32 %v591, 0.036000773
        %v638 = vmul.f32 %v636, 0.036000773
        %v639 = vadd.f32 %v634, %v637
        %v640 = vadd.f32 %v635, %v638
        %v641 = vld [vmem:[%s585 + $0x11] sm:$0xff]
        %v642 = vmul.f32 %v641, 0.0075987587
        %v643 = vadd.f32 %v639, %v597
        %v644 = vadd.f32 %v640, %v642
        %v645 = vld [vmem:[%s585 + $0x12] sm:$0xff]
        %v646 = vmul.f32 %v601, 0.0010283804
        %v647 = vmul.f32 %v645, 0.0010283804
        %v648 = vadd.f32 %v643, %v646
        %v649 = vadd.f32 %v644, %v647
        %s650 = scalar_lea.vmem [#allocation3], 32
        %651 = vst.msk [vmem:[%s650] sm:$0xff] %vm276, 0.0
        %652 = vst.msk [vmem:[%s650 + $0x8] sm:$0xff] %vm276, 0.0
        %653 = vst.msk [vmem:[%s650] sm:$0xff] %vm279, 0.0
        %654 = vst.msk [vmem:[%s650 + $0x8] sm:$0xff] %vm279, 0.0
        %657 = vrot.lane.b32.xlu0 %v648, 5
        %v658 = vpop.permute.xlu0 %657
        %659 = vrot.lane.b32.xlu0 %v649, 5
        %v660 = vpop.permute.xlu0 %659
        %663 = vst.msk [vmem:[%s650] sm:$0xff] %vm290, %v658
        %664 = vst.msk [vmem:[%s650 + $0x8] sm:$0xff] %vm290, %v660
        %v665 = vld [vmem:[%s650] sm:$0xff]
        %v666 = vld [vmem:[%s650 + $0x8] sm:$0xff]
        %v667 = vmul.f32 %v665, 0.0010283804
        %v668 = vmul.f32 %v666, 0.0010283804
        %v669 = vmul.f32 %v665, 0.0075987587
        %v670 = vmul.f32 %v666, 0.0075987587
        %673 = vrot.lane.b32.xlu0 %v669, 127
        %v674 = vpop.permute.xlu0 %673
        %675 = vrot.lane.b32.xlu0 %v670, 127
        %v676 = vpop.permute.xlu0 %675
        %v679 = vadd.f32 %v667, %v674
        %v680 = vadd.f32 %v668, %v676
        %v681 = vmul.f32 %v665, 0.036000773
        %v682 = vmul.f32 %v666, 0.036000773
        %685 = vrot.lane.b32.xlu0 %v681, 126
        %v686 = vpop.permute.xlu0 %685
        %687 = vrot.lane.b32.xlu0 %v682, 126
        %v688 = vpop.permute.xlu0 %687
        %v691 = vadd.f32 %v679, %v686
        %v692 = vadd.f32 %v680, %v688
        %v693 = vmul.f32 %v665, 0.1093607
        %v694 = vmul.f32 %v666, 0.1093607
        %697 = vrot.lane.b32.xlu0 %v693, 125
        %v698 = vpop.permute.xlu0 %697
        %699 = vrot.lane.b32.xlu0 %v694, 125
        %v700 = vpop.permute.xlu0 %699
        %v703 = vadd.f32 %v691, %v698
        %v704 = vadd.f32 %v692, %v700
        %v705 = vmul.f32 %v665, 0.21300554
        %v706 = vmul.f32 %v666, 0.21300554
        %709 = vrot.lane.b32.xlu0 %v705, 124
        %v710 = vpop.permute.xlu0 %709
        %711 = vrot.lane.b32.xlu0 %v706, 124
        %v712 = vpop.permute.xlu0 %711
        %v715 = vadd.f32 %v703, %v710
        %v716 = vadd.f32 %v704, %v712
        %v717 = vmul.f32 %v665, 0.26601174
        %v718 = vmul.f32 %v666, 0.26601174
        %721 = vrot.lane.b32.xlu0 %v717, 123
        %v722 = vpop.permute.xlu0 %721
        %723 = vrot.lane.b32.xlu0 %v718, 123
        %v724 = vpop.permute.xlu0 %723
        %v727 = vadd.f32 %v715, %v722
        %v728 = vadd.f32 %v716, %v724
        %729 = vrot.lane.b32.xlu0 %v705, 122
        %v730 = vpop.permute.xlu0 %729
        %731 = vrot.lane.b32.xlu0 %v706, 122
        %v732 = vpop.permute.xlu0 %731
        %v735 = vadd.f32 %v727, %v730
        %v736 = vadd.f32 %v728, %v732
        %737 = vrot.lane.b32.xlu0 %v693, 121
        %v738 = vpop.permute.xlu0 %737
        %739 = vrot.lane.b32.xlu0 %v694, 121
        %v740 = vpop.permute.xlu0 %739
        %v743 = vadd.f32 %v735, %v738
        %v744 = vadd.f32 %v736, %v740
        %745 = vrot.lane.b32.xlu0 %v681, 120
        %v746 = vpop.permute.xlu0 %745
        %747 = vrot.lane.b32.xlu0 %v682, 120
        %v748 = vpop.permute.xlu0 %747
        %v751 = vadd.f32 %v743, %v746
        %v752 = vadd.f32 %v744, %v748
        %753 = vrot.lane.b32.xlu0 %v669, 119
        %v754 = vpop.permute.xlu0 %753
        %755 = vrot.lane.b32.xlu0 %v670, 119
        %v756 = vpop.permute.xlu0 %755
        %v759 = vadd.f32 %v751, %v754
        %v760 = vadd.f32 %v752, %v756
        %763 = vrot.lane.b32.xlu0 %v667, 118
        %v764 = vpop.permute.xlu0 %763
        %765 = vrot.lane.b32.xlu0 %v668, 118
        %v766 = vpop.permute.xlu0 %765
        %v769 = vadd.f32 %v759, %v764
        %v770 = vadd.f32 %v760, %v766
        %s771 = scalar_lea.vmem [#allocation2], 96
        %772 = vst.msk [vmem:[%s771] sm:$0x1f] %vm210, 0.0
        %773 = vst.msk [vmem:[%s771 + $0x15] sm:$0x1f] %vm210, 0.0
        %774 = vst.msk [vmem:[%s771 + $0x5] sm:$0xff] %vm213, %v206
        %775 = vst.msk [vmem:[%s771 + $0xd] sm:$0xff] %vm213, %v207
        %v776 = vld [vmem:[%s771] sm:$0xff]
        %v777 = vld [vmem:[%s771 + $0x8] sm:$0xff]
        %v778 = vmul.f32 %v776, 0.0010283804
        %v779 = vmul.f32 %v777, 0.0010283804
        %v780 = vld [vmem:[%s771 + $0x1] sm:$0xff]
        %v781 = vld [vmem:[%s771 + $0x9] sm:$0xff]
        %v782 = vmul.f32 %v780, 0.0075987587
        %v783 = vmul.f32 %v781, 0.0075987587
        %v784 = vadd.f32 %v778, %v782
        %v785 = vadd.f32 %v779, %v783
        %v786 = vld [vmem:[%s771 + $0x2] sm:$0xff]
        %v787 = vld [vmem:[%s771 + $0xa] sm:$0xff]
        %v788 = vmul.f32 %v786, 0.036000773
        %v789 = vmul.f32 %v787, 0.036000773
        %v790 = vadd.f32 %v784, %v788
        %v791 = vadd.f32 %v785, %v789
        %v792 = vld [vmem:[%s771 + $0x3] sm:$0xff]
        %v793 = vld [vmem:[%s771 + $0xb] sm:$0xff]
        %v794 = vmul.f32 %v792, 0.1093607
        %v795 = vmul.f32 %v793, 0.1093607
        %v796 = vadd.f32 %v790, %v794
        %v797 = vadd.f32 %v791, %v795
        %v798 = vld [vmem:[%s771 + $0x4] sm:$0xff]
        %v799 = vld [vmem:[%s771 + $0xc] sm:$0xff]
        %v800 = vmul.f32 %v798, 0.21300554
        %v801 = vmul.f32 %v799, 0.21300554
        %v802 = vadd.f32 %v796, %v800
        %v803 = vadd.f32 %v797, %v801
        %v804 = vld [vmem:[%s771 + $0x5] sm:$0xff]
        %v805 = vld [vmem:[%s771 + $0xd] sm:$0xff]
        %v806 = vmul.f32 %v804, 0.26601174
        %v807 = vmul.f32 %v805, 0.26601174
        %v808 = vadd.f32 %v802, %v806
        %v809 = vadd.f32 %v803, %v807
        %v810 = vld [vmem:[%s771 + $0x6] sm:$0xff]
        %v811 = vld [vmem:[%s771 + $0xe] sm:$0xff]
        %v812 = vmul.f32 %v810, 0.21300554
        %v813 = vmul.f32 %v811, 0.21300554
        %v814 = vadd.f32 %v808, %v812
        %v815 = vadd.f32 %v809, %v813
        %v816 = vld [vmem:[%s771 + $0x7] sm:$0xff]
        %v817 = vld [vmem:[%s771 + $0xf] sm:$0xff]
        %v818 = vmul.f32 %v816, 0.1093607
        %v819 = vmul.f32 %v817, 0.1093607
        %v820 = vadd.f32 %v814, %v818
        %v821 = vadd.f32 %v815, %v819
        %v822 = vld [vmem:[%s771 + $0x10] sm:$0xff]
        %v823 = vmul.f32 %v777, 0.036000773
        %v824 = vmul.f32 %v822, 0.036000773
        %v825 = vadd.f32 %v820, %v823
        %v826 = vadd.f32 %v821, %v824
        %v827 = vld [vmem:[%s771 + $0x11] sm:$0xff]
        %v828 = vmul.f32 %v827, 0.0075987587
        %v829 = vadd.f32 %v825, %v783
        %v830 = vadd.f32 %v826, %v828
        %v831 = vld [vmem:[%s771 + $0x12] sm:$0xff]
        %v832 = vmul.f32 %v787, 0.0010283804
        %v833 = vmul.f32 %v831, 0.0010283804
        %v834 = vadd.f32 %v829, %v832
        %v835 = vadd.f32 %v830, %v833
        %s836 = scalar_lea.vmem [#allocation3], 48
        %837 = vst.msk [vmem:[%s836] sm:$0xff] %vm276, 0.0
        %838 = vst.msk [vmem:[%s836 + $0x8] sm:$0xff] %vm276, 0.0
        %839 = vst.msk [vmem:[%s836] sm:$0xff] %vm279, 0.0
        %840 = vst.msk [vmem:[%s836 + $0x8] sm:$0xff] %vm279, 0.0
        %843 = vrot.lane.b32.xlu0 %v834, 5
        %v844 = vpop.permute.xlu0 %843
        %845 = vrot.lane.b32.xlu0 %v835, 5
        %v846 = vpop.permute.xlu0 %845
        %849 = vst.msk [vmem:[%s836] sm:$0xff] %vm290, %v844
        %850 = vst.msk [vmem:[%s836 + $0x8] sm:$0xff] %vm290, %v846
        %v851 = vld [vmem:[%s836] sm:$0xff]
        %v852 = vld [vmem:[%s836 + $0x8] sm:$0xff]
        %v853 = vmul.f32 %v851, 0.0010283804
        %v854 = vmul.f32 %v852, 0.0010283804
        %v855 = vmul.f32 %v851, 0.0075987587
        %v856 = vmul.f32 %v852, 0.0075987587
        %859 = vrot.lane.b32.xlu0 %v855, 127
        %v860 = vpop.permute.xlu0 %859
        %861 = vrot.lane.b32.xlu0 %v856, 127
        %v862 = vpop.permute.xlu0 %861
        %v865 = vadd.f32 %v853, %v860
        %v866 = vadd.f32 %v854, %v862
        %v867 = vmul.f32 %v851, 0.036000773
        %v868 = vmul.f32 %v852, 0.036000773
        %871 = vrot.lane.b32.xlu0 %v867, 126
        %v872 = vpop.permute.xlu0 %871
        %873 = vrot.lane.b32.xlu0 %v868, 126
        %v874 = vpop.permute.xlu0 %873
        %v877 = vadd.f32 %v865, %v872
        %v878 = vadd.f32 %v866, %v874
        %v879 = vmul.f32 %v851, 0.1093607
        %v880 = vmul.f32 %v852, 0.1093607
        %883 = vrot.lane.b32.xlu0 %v879, 125
        %v884 = vpop.permute.xlu0 %883
        %885 = vrot.lane.b32.xlu0 %v880, 125
        %v886 = vpop.permute.xlu0 %885
        %v889 = vadd.f32 %v877, %v884
        %v890 = vadd.f32 %v878, %v886
        %v891 = vmul.f32 %v851, 0.21300554
        %v892 = vmul.f32 %v852, 0.21300554
        %895 = vrot.lane.b32.xlu0 %v891, 124
        %v896 = vpop.permute.xlu0 %895
        %897 = vrot.lane.b32.xlu0 %v892, 124
        %v898 = vpop.permute.xlu0 %897
        %v901 = vadd.f32 %v889, %v896
        %v902 = vadd.f32 %v890, %v898
        %v903 = vmul.f32 %v851, 0.26601174
        %v904 = vmul.f32 %v852, 0.26601174
        %907 = vrot.lane.b32.xlu0 %v903, 123
        %v908 = vpop.permute.xlu0 %907
        %909 = vrot.lane.b32.xlu0 %v904, 123
        %v910 = vpop.permute.xlu0 %909
        %v913 = vadd.f32 %v901, %v908
        %v914 = vadd.f32 %v902, %v910
        %915 = vrot.lane.b32.xlu0 %v891, 122
        %v916 = vpop.permute.xlu0 %915
        %917 = vrot.lane.b32.xlu0 %v892, 122
        %v918 = vpop.permute.xlu0 %917
        %v921 = vadd.f32 %v913, %v916
        %v922 = vadd.f32 %v914, %v918
        %923 = vrot.lane.b32.xlu0 %v879, 121
        %v924 = vpop.permute.xlu0 %923
        %925 = vrot.lane.b32.xlu0 %v880, 121
        %v926 = vpop.permute.xlu0 %925
        %v929 = vadd.f32 %v921, %v924
        %v930 = vadd.f32 %v922, %v926
        %931 = vrot.lane.b32.xlu0 %v867, 120
        %v932 = vpop.permute.xlu0 %931
        %933 = vrot.lane.b32.xlu0 %v868, 120
        %v934 = vpop.permute.xlu0 %933
        %v937 = vadd.f32 %v929, %v932
        %v938 = vadd.f32 %v930, %v934
        %939 = vrot.lane.b32.xlu0 %v855, 119
        %v940 = vpop.permute.xlu0 %939
        %941 = vrot.lane.b32.xlu0 %v856, 119
        %v942 = vpop.permute.xlu0 %941
        %v945 = vadd.f32 %v937, %v940
        %v946 = vadd.f32 %v938, %v942
        %949 = vrot.lane.b32.xlu0 %v853, 118
        %v950 = vpop.permute.xlu0 %949
        %951 = vrot.lane.b32.xlu0 %v854, 118
        %v952 = vpop.permute.xlu0 %951
        %v955 = vadd.f32 %v945, %v950
        %v956 = vadd.f32 %v946, %v952
        %s957 = scalar_lea.vmem [#allocation2], 128
        %958 = vst.msk [vmem:[%s957] sm:$0x1f] %vm210, 0.0
        %959 = vst.msk [vmem:[%s957 + $0x15] sm:$0x1f] %vm210, 0.0
        %960 = vst.msk [vmem:[%s957 + $0x5] sm:$0xff] %vm213, %v208
        %961 = vst.msk [vmem:[%s957 + $0xd] sm:$0xff] %vm213, %v209
        %v962 = vld [vmem:[%s957] sm:$0xff]
        %v963 = vld [vmem:[%s957 + $0x8] sm:$0xff]
        %v964 = vmul.f32 %v962, 0.0010283804
        %v965 = vmul.f32 %v963, 0.0010283804
        %v966 = vld [vmem:[%s957 + $0x1] sm:$0xff]
        %v967 = vld [vmem:[%s957 + $0x9] sm:$0xff]
        %v968 = vmul.f32 %v966, 0.0075987587
        %v969 = vmul.f32 %v967, 0.0075987587
        %v970 = vadd.f32 %v964, %v968
        %v971 = vadd.f32 %v965, %v969
        %v972 = vld [vmem:[%s957 + $0x2] sm:$0xff]
        %v973 = vld [vmem:[%s957 + $0xa] sm:$0xff]
        %v974 = vmul.f32 %v972, 0.036000773
        %v975 = vmul.f32 %v973, 0.036000773
        %v976 = vadd.f32 %v970, %v974
        %v977 = vadd.f32 %v971, %v975
        %v978 = vld [vmem:[%s957 + $0x3] sm:$0xff]
        %v979 = vld [vmem:[%s957 + $0xb] sm:$0xff]
        %v980 = vmul.f32 %v978, 0.1093607
        %v981 = vmul.f32 %v979, 0.1093607
        %v982 = vadd.f32 %v976, %v980
        %v983 = vadd.f32 %v977, %v981
        %v984 = vld [vmem:[%s957 + $0x4] sm:$0xff]
        %v985 = vld [vmem:[%s957 + $0xc] sm:$0xff]
        %v986 = vmul.f32 %v984, 0.21300554
        %v987 = vmul.f32 %v985, 0.21300554
        %v988 = vadd.f32 %v982, %v986
        %v989 = vadd.f32 %v983, %v987
        %v990 = vld [vmem:[%s957 + $0x5] sm:$0xff]
        %v991 = vld [vmem:[%s957 + $0xd] sm:$0xff]
        %v992 = vmul.f32 %v990, 0.26601174
        %v993 = vmul.f32 %v991, 0.26601174
        %v994 = vadd.f32 %v988, %v992
        %v995 = vadd.f32 %v989, %v993
        %v996 = vld [vmem:[%s957 + $0x6] sm:$0xff]
        %v997 = vld [vmem:[%s957 + $0xe] sm:$0xff]
        %v998 = vmul.f32 %v996, 0.21300554
        %v999 = vmul.f32 %v997, 0.21300554
        %v1000 = vadd.f32 %v994, %v998
        %v1001 = vadd.f32 %v995, %v999
        %v1002 = vld [vmem:[%s957 + $0x7] sm:$0xff]
        %v1003 = vld [vmem:[%s957 + $0xf] sm:$0xff]
        %v1004 = vmul.f32 %v1002, 0.1093607
        %v1005 = vmul.f32 %v1003, 0.1093607
        %v1006 = vadd.f32 %v1000, %v1004
        %v1007 = vadd.f32 %v1001, %v1005
        %v1008 = vld [vmem:[%s957 + $0x10] sm:$0xff]
        %v1009 = vmul.f32 %v963, 0.036000773
        %v1010 = vmul.f32 %v1008, 0.036000773
        %v1011 = vadd.f32 %v1006, %v1009
        %v1012 = vadd.f32 %v1007, %v1010
        %v1013 = vld [vmem:[%s957 + $0x11] sm:$0xff]
        %v1014 = vmul.f32 %v1013, 0.0075987587
        %v1015 = vadd.f32 %v1011, %v969
        %v1016 = vadd.f32 %v1012, %v1014
        %v1017 = vld [vmem:[%s957 + $0x12] sm:$0xff]
        %v1018 = vmul.f32 %v973, 0.0010283804
        %v1019 = vmul.f32 %v1017, 0.0010283804
        %v1020 = vadd.f32 %v1015, %v1018
        %v1021 = vadd.f32 %v1016, %v1019
        %s1022 = scalar_lea.vmem [#allocation3], 64
        %1023 = vst.msk [vmem:[%s1022] sm:$0xff] %vm276, 0.0
        %1024 = vst.msk [vmem:[%s1022 + $0x8] sm:$0xff] %vm276, 0.0
        %1025 = vst.msk [vmem:[%s1022] sm:$0xff] %vm279, 0.0
        %1026 = vst.msk [vmem:[%s1022 + $0x8] sm:$0xff] %vm279, 0.0
        %1029 = vrot.lane.b32.xlu0 %v1020, 5
        %v1030 = vpop.permute.xlu0 %1029
        %1031 = vrot.lane.b32.xlu0 %v1021, 5
        %v1032 = vpop.permute.xlu0 %1031
        %1035 = vst.msk [vmem:[%s1022] sm:$0xff] %vm290, %v1030
        %1036 = vst.msk [vmem:[%s1022 + $0x8] sm:$0xff] %vm290, %v1032
        %v1037 = vld [vmem:[%s1022] sm:$0xff]
        %v1038 = vld [vmem:[%s1022 + $0x8] sm:$0xff]
        %v1039 = vmul.f32 %v1037, 0.0010283804
        %v1040 = vmul.f32 %v1038, 0.0010283804
        %v1041 = vmul.f32 %v1037, 0.0075987587
        %v1042 = vmul.f32 %v1038, 0.0075987587
        %1045 = vrot.lane.b32.xlu0 %v1041, 127
        %v1046 = vpop.permute.xlu0 %1045
        %1047 = vrot.lane.b32.xlu0 %v1042, 127
        %v1048 = vpop.permute.xlu0 %1047
        %v1051 = vadd.f32 %v1039, %v1046
        %v1052 = vadd.f32 %v1040, %v1048
        %v1053 = vmul.f32 %v1037, 0.036000773
        %v1054 = vmul.f32 %v1038, 0.036000773
        %1057 = vrot.lane.b32.xlu0 %v1053, 126
        %v1058 = vpop.permute.xlu0 %1057
        %1059 = vrot.lane.b32.xlu0 %v1054, 126
        %v1060 = vpop.permute.xlu0 %1059
        %v1063 = vadd.f32 %v1051, %v1058
        %v1064 = vadd.f32 %v1052, %v1060
        %v1065 = vmul.f32 %v1037, 0.1093607
        %v1066 = vmul.f32 %v1038, 0.1093607
        %1069 = vrot.lane.b32.xlu0 %v1065, 125
        %v1070 = vpop.permute.xlu0 %1069
        %1071 = vrot.lane.b32.xlu0 %v1066, 125
        %v1072 = vpop.permute.xlu0 %1071
        %v1075 = vadd.f32 %v1063, %v1070
        %v1076 = vadd.f32 %v1064, %v1072
        %v1077 = vmul.f32 %v1037, 0.21300554
        %v1078 = vmul.f32 %v1038, 0.21300554
        %1081 = vrot.lane.b32.xlu0 %v1077, 124
        %v1082 = vpop.permute.xlu0 %1081
        %1083 = vrot.lane.b32.xlu0 %v1078, 124
        %v1084 = vpop.permute.xlu0 %1083
        %v1087 = vadd.f32 %v1075, %v1082
        %v1088 = vadd.f32 %v1076, %v1084
        %v1089 = vmul.f32 %v1037, 0.26601174
        %v1090 = vmul.f32 %v1038, 0.26601174
        %1093 = vrot.lane.b32.xlu0 %v1089, 123
        %v1094 = vpop.permute.xlu0 %1093
        %1095 = vrot.lane.b32.xlu0 %v1090, 123
        %v1096 = vpop.permute.xlu0 %1095
        %v1099 = vadd.f32 %v1087, %v1094
        %v1100 = vadd.f32 %v1088, %v1096
        %1101 = vrot.lane.b32.xlu0 %v1077, 122
        %v1102 = vpop.permute.xlu0 %1101
        %1103 = vrot.lane.b32.xlu0 %v1078, 122
        %v1104 = vpop.permute.xlu0 %1103
        %v1107 = vadd.f32 %v1099, %v1102
        %v1108 = vadd.f32 %v1100, %v1104
        %1109 = vrot.lane.b32.xlu0 %v1065, 121
        %v1110 = vpop.permute.xlu0 %1109
        %1111 = vrot.lane.b32.xlu0 %v1066, 121
        %v1112 = vpop.permute.xlu0 %1111
        %v1115 = vadd.f32 %v1107, %v1110
        %v1116 = vadd.f32 %v1108, %v1112
        %1117 = vrot.lane.b32.xlu0 %v1053, 120
        %v1118 = vpop.permute.xlu0 %1117
        %1119 = vrot.lane.b32.xlu0 %v1054, 120
        %v1120 = vpop.permute.xlu0 %1119
        %v1123 = vadd.f32 %v1115, %v1118
        %v1124 = vadd.f32 %v1116, %v1120
        %1125 = vrot.lane.b32.xlu0 %v1041, 119
        %v1126 = vpop.permute.xlu0 %1125
        %1127 = vrot.lane.b32.xlu0 %v1042, 119
        %v1128 = vpop.permute.xlu0 %1127
        %v1131 = vadd.f32 %v1123, %v1126
        %v1132 = vadd.f32 %v1124, %v1128
        %1135 = vrot.lane.b32.xlu0 %v1039, 118
        %v1136 = vpop.permute.xlu0 %1135
        %1137 = vrot.lane.b32.xlu0 %v1040, 118
        %v1138 = vpop.permute.xlu0 %1137
        %v1141 = vadd.f32 %v1131, %v1136
        %v1142 = vadd.f32 %v1132, %v1138
        %v1143 = vmul.f32 %v397, %v397
        %v1144 = vmul.f32 %v398, %v398
        %v1145 = vmul.f32 %v583, %v583
        %v1146 = vmul.f32 %v584, %v584
        %v1147 = vmul.f32 %v397, %v583
        %v1148 = vmul.f32 %v398, %v584
        %v1149 = vsub.f32 %v769, %v1143
        %v1150 = vsub.f32 %v770, %v1144
        %v1151 = vsub.f32 %v955, %v1145
        %v1152 = vsub.f32 %v956, %v1146
        %v1153 = vsub.f32 %v1141, %v1147
        %v1154 = vsub.f32 %v1142, %v1148
        %v1155 = vmul.f32 %v1147, 2.0
        %v1156 = vmul.f32 %v1148, 2.0
        %v1157 = vadd.f32 %v1155, 0.0001
        %v1158 = vadd.f32 %v1156, 0.0001
        %v1159 = vmul.f32 %v1153, 2.0
        %v1160 = vmul.f32 %v1154, 2.0
        %v1161 = vadd.f32 %v1159, 0.0009
        %v1162 = vadd.f32 %v1160, 0.0009
        %v1163 = vmul.f32 %v1157, %v1161
        %v1164 = vmul.f32 %v1158, %v1162
        %v1165 = vadd.f32 %v1143, %v1145
        %v1166 = vadd.f32 %v1144, %v1146
        %v1167 = vadd.f32 %v1165, 0.0001
        %v1168 = vadd.f32 %v1166, 0.0001
        %v1169 = vadd.f32 %v1149, %v1151
        %v1170 = vadd.f32 %v1150, %v1152
        %v1171 = vadd.f32 %v1169, 0.0009
        %v1172 = vadd.f32 %v1170, 0.0009
        %v1173 = vmul.f32 %v1167, %v1171
        %v1174 = vmul.f32 %v1168, %v1172
        %v1175 = vrcp.pop %v1173
        %v1176 = vmul.f32 %v1163, %v1175
        %v1177 = vrcp.pop %v1174
        %v1178 = vmul.f32 %v1164, %v1177
        %v1179 = vsel %vm213, %v1176, 0.0
        %v1180 = vsel %vm213, %v1178, 0.0
        %v1181 = vadd.f32 %v1179, %v1180
        %1182 = vadd.xlane.f32.xlu0 %v1181
        %v1183 = vpop.xlane.xlu0 %1182
        %v1184 = vrot.slane %v1183, 4
        %v1185 = vadd.f32 %v1183, %v1184
        %v1186 = vrot.slane %v1185, 2
        %v1187 = vadd.f32 %v1185, %v1186
        %v1188 = vrot.slane %v1187, 1
        %v1189 = vadd.f32 %v1187, %v1188
        %s1190 = vtos %v1189
        %v1191 = vstv %s1190
        %vm1192 = vcmask 0
        %1193 = vst.msk [vmem:[%s199] sm:$0x1] %vm1192, %v1191
        %p1194 = scmp.lt.s32.totalorder %s19, 7
        %s1195 = scalar_select %p1194, %s19, 7
        %s1196 = scalar_lea.vmem %s2, %s1195
        // Predicated region
        $region37: #{tpu_custom_call.1} parent=27 // pred_check
          %p1197 = pneg %p89
        $region38: #{tpu_custom_call.1} parent=27 // pred_check_branch
          %1199 = sbr.rel (%p1197) target = $region40
        $region39: #{tpu_custom_call.1} parent=27 // pred_region
          _
        $region40: #{tpu_custom_call.1} parent=27 // pred_fallthru
          _
      $region28: #{tpu_custom_call.1} parent=5 // pred_fallthru
        _
      %p1200 = scmp.le.s32.totalorder 2, %s14
      // Predicated region
      $region41: #{tpu_custom_call.1} parent=5 // pred_check
        %p1201 = pneg %p1200
      $region42: #{tpu_custom_call.1} parent=5 // pred_check_branch
        %1203 = sbr.rel (%p1201) target = $region44
      $region43: #{tpu_custom_call.1} parent=5 // pred_region
        %s1204 = ssub.s32 %s14, 2
        // Predicated region
        $region45: #{tpu_custom_call.1} parent=43 // pred_check
          %p1205 = pneg %p95
        $region46: #{tpu_custom_call.1} parent=43 // pred_check_branch
          %1207 = sbr.rel (%p1205) target = $region48
        $region47: #{tpu_custom_call.1} parent=43 // pred_region
          %p1208 = scmp.lt.s32.totalorder %s20, 7
          %s1209 = scalar_select %p1208, %s20, 7
          %s1210 = scalar_lea.vmem %s2, %s1209
        $region48: #{tpu_custom_call.1} parent=43 // pred_fallthru
          _
      $region44: #{tpu_custom_call.1} parent=5 // pred_fallthru
        _
    $region6: #{tpu_custom_call.1} parent=1 // loop_footer
      %s18 = sadd.s32 1, %s14
    $region7: #{tpu_custom_call.1} parent=1 // loop_footer_branch
      %13 = sbr.rel target = $region3
    $region8: #{tpu_custom_call.1} parent=1 // loop_exit
      _
    %1211 = vsyncpa [#allocation5], 1
    %s1212 = scalar_lea.sflag [#allocation5], 1
    %1213 = vsyncpa %s1212, 1
    %1214 = vsyncpa [#allocation7], 1
    %s1215 = scalar_lea.sflag [#allocation7], 1
    %1216 = vsyncpa %s1215, 1

</llo_original>
